<compile_context>
chip_gen: v6e
topology: v6e:2x2x1
jax: 0.10.0
libtpu: 0.0.40
codegen_flags: <defaults>
</compile_context>

<pallas_src>
import functools

import jax
import jax.numpy as jnp
from jax.experimental import pallas as pl
from jax.experimental.pallas import tpu as pltpu

_LANES = 128


def _round_up(x, m):
    return ((x + m - 1) // m) * m


def _gravity_linear_kernel(x_ref, w_ref, b_ref, o_ref):
    """One MXU matmul does deinterleave + dot-product + lane compaction.

    x_ref: (tile_rows, D*128) VMEM -- lane-interleaved features of 128 rows
           per sublane-row (free view of vX's HBM layout).
    w_ref: (D*128, 128) VMEM      -- W[D*j + d, j] = weight[d], else 0.
    b_ref: (1,) SMEM              -- bias scalar.
    o_ref: (tile_rows, 128) VMEM  -- dense, lane-dense outputs.
    """
    b = b_ref[0]
    y = jnp.dot(
        x_ref[...],
        w_ref[...],
        preferred_element_type=jnp.float32,
        precision=jax.lax.Precision.HIGHEST,
    )
    o_ref[...] = (y + b).astype(o_ref.dtype)


@functools.partial(jax.jit, static_argnames=("tile_m",))
def nn_original_gravity_forward(vX, weight, bias, *, tile_m=262_144):
    """Pallas implementation of NN_OriginalGravity.forward.

    vX:     (n_orig, n_dest, dim_input) float32
    weight: (1, dim_input)  -- torch.nn.Linear weight layout (out, in)
    bias:   (1,)            -- torch.nn.Linear bias
    returns (n_orig, n_dest, 1) float32
    """
    n_orig, n_dest, dim_input = vX.shape
    M = n_orig * n_dest
    lane_k = dim_input * _LANES  # contraction dim of the deinterleave matmul

    # ---- free view of the input (no transpose, no tile-multiple padding) ----
    x_flat = vX.reshape(M * dim_input)
    m128 = _round_up(M, _LANES)
    if m128 != M:
        # TODO(synk): ragged tail (M % 128 != 0) costs one extra pass over the
        # input (pad) and one small output slice; the aligned path is zero-copy.
        x_flat = jnp.pad(x_flat, (0, (m128 - M) * dim_input))
    n_rows = m128 // _LANES
    xv = x_flat.reshape(n_rows, lane_k)  # contiguous -> free reshape

    # ---- constant deinterleave-and-dot matrix, built once (128 KiB) ----
    w_vec = weight.reshape(dim_input).astype(jnp.float32)
    eye = jnp.eye(_LANES, dtype=jnp.float32)
    # W[dim_input * j + d, j] = w_vec[d]
    W = jnp.repeat(eye, dim_input, axis=0) * jnp.tile(w_vec, _LANES)[:, None]
    b = bias.reshape(1).astype(jnp.float32)

    # ---- tile sizing: >=2 grid steps when possible (v7x dual-TC / megacore) ----
    rows_cap = max(8, int(tile_m) // _LANES)          # default 2048 rows-of-128
    if n_rows <= 8:
        tile_rows = n_rows                            # full extent (tiny problem)
    else:
        tile_rows = min(rows_cap, _round_up(pl.cdiv(n_rows, 2), 8))
    grid_m = pl.cdiv(n_rows, tile_rows)               # last block may be partial

    # ---- VMEM budget from the actual footprint (double-buffered blocks) ----
    x_blk_bytes = tile_rows * lane_k * 4
    o_blk_bytes = tile_rows * _LANES * 4
    w_bytes = lane_k * _LANES * 4
    vmem_bytes = 2 * (x_blk_bytes + o_blk_bytes) + 2 * w_bytes + (4 << 20)
    vmem_bytes = int(min(max(vmem_bytes, 8 << 20), 32 << 20))

    out2d = pl.pallas_call(
        _gravity_linear_kernel,
        out_shape=jax.ShapeDtypeStruct((n_rows, _LANES), vX.dtype),
        grid_spec=pltpu.PrefetchScalarGridSpec(
            num_scalar_prefetch=0,
            grid=(grid_m,),
            in_specs=[
                pl.BlockSpec((tile_rows, lane_k), lambda i: (i, 0)),   # x view
                pl.BlockSpec((lane_k, _LANES), lambda i: (0, 0)),      # W (resident)
                pl.BlockSpec(memory_space=pltpu.MemorySpace.SMEM),     # bias
            ],
            out_specs=pl.BlockSpec((tile_rows, _LANES), lambda i: (i, 0)),
        ),
        compiler_params=pltpu.CompilerParams(
            dimension_semantics=("parallel",),
            vmem_limit_bytes=vmem_bytes,
        ),
    )(xv, W, b)

    if m128 == M:
        out_flat = out2d.reshape(M)        # free view
    else:
        out_flat = out2d.reshape(m128)[:M]
    return out_flat.reshape(n_orig, n_dest, 1)


if __name__ == "__main__":
    # df='exponential' -> dim_input=2 (log destination feature, distance).
    dim_input = 2

    key = jax.random.PRNGKey(0)
    kx1, kx2, kw, kb = jax.random.split(key, 4)

    # Deterministic parameter init (mimics torch Linear's U(-1/sqrt(fan_in), ..)).
    bound = 1.0 / jnp.sqrt(jnp.float32(dim_input))
    weight = jax.random.uniform(kw, (1, dim_input), jnp.float32, -bound, bound)
    bias = jax.random.uniform(kb, (1,), jnp.float32, -bound, bound)

    def ref(vX):
        return (vX * weight.reshape(dim_input)).sum(-1, keepdims=True) + bias[0]

    # Case 1: M = 32*64 = 2048 (multiple of 128) -> zero-copy path, 2-step grid.
    vX1 = jax.random.normal(kx1, (32, 64, dim_input), dtype=jnp.float32)
    out1 = jax.block_until_ready(
        nn_original_gravity_forward(vX1, weight, bias, tile_m=1024))
    assert out1.shape == (32, 64, 1)
    assert jnp.allclose(out1, ref(vX1), atol=1e-5, rtol=1e-5)

    # Case 2: ragged M = 8*8 = 64 (< 128) -> padded-tail path.
    vX2 = jax.random.normal(kx2, (8, 8, dim_input), dtype=jnp.float32)
    out2 = jax.block_until_ready(nn_original_gravity_forward(vX2, weight, bias))
    assert out2.shape == (8, 8, 1)
    assert jnp.allclose(out2, ref(vX2), atol=1e-5, rtol=1e-5)

    print("KERNEL_OK")
</pallas_src>

<mosaic_0001>
module attributes {stable_mosaic.version = 11 : i64} {
  func.func @_gravity_linear_kernel(%arg0: i32, %arg1: memref<8x256xf32, #tpu.memory_space<vmem>>, %arg2: memref<256x128xf32, #tpu.memory_space<vmem>>, %arg3: memref<1xf32, #tpu.memory_space<smem>>, %arg4: memref<8x128xf32, #tpu.memory_space<vmem>>) attributes {dimension_semantics = [#tpu.dimension_semantics<parallel>], iteration_bounds = array<i64: 2>, scalar_prefetch = 0 : i64, scratch_operands = 0 : i64, tpu.core_type = #tpu.core_type<tc>, window_params = [{transform_indices = @transform_0, window_bounds = array<i64: 8, 256>}, {pipeline_mode = #tpu.pipeline_mode<synchronous>, transform_indices = @transform_1, window_bounds = array<i64: 256, 128>}, {transform_indices = @transform_2, window_bounds = array<i64: 1>}, {transform_indices = @transform_3, window_bounds = array<i64: 8, 128>}]} {
    %c0 = arith.constant 0 : index
    %0 = memref.load %arg3[%c0] : memref<1xf32, #tpu.memory_space<smem>>
    %c0_0 = arith.constant 0 : index
    %c0_1 = arith.constant 0 : index
    %1 = vector.load %arg1[%c0_0, %c0_1] : memref<8x256xf32, #tpu.memory_space<vmem>>, vector<8x256xf32>
    %c0_2 = arith.constant 0 : index
    %c0_3 = arith.constant 0 : index
    %2 = vector.load %arg2[%c0_2, %c0_3] : memref<256x128xf32, #tpu.memory_space<vmem>>, vector<256x128xf32>
    %cst = arith.constant dense<0.000000e+00> : vector<8x128xf32>
    %3 = tpu.matmul %1, %2, %cst {dimension_numbers = #tpu.dot_dimension_numbers<[1], [0], [0], [1], [0, 0, 1, 1], [], []>, precision = #tpu.contract_precision<fp32>} : vector<8x256xf32>, vector<256x128xf32>, vector<8x128xf32> -> vector<8x128xf32>
    %4 = vector.broadcast %0 : f32 to vector<8x128xf32>
    %5 = arith.addf %3, %4 : vector<8x128xf32>
    %c0_4 = arith.constant 0 : index
    %c0_5 = arith.constant 0 : index
    %6 = vector.load %arg4[%c0_4, %c0_5] : memref<8x128xf32, #tpu.memory_space<vmem>>, vector<8x128xf32>
    tpu.vector_store %arg4[%c0_4, %c0_5], %5 {strides = array<i32>} : memref<8x128xf32, #tpu.memory_space<vmem>>, vector<8x128xf32>,
    return
  }
  func.func @transform_0(%arg0: i32) -> (i32, i32) {
    %c0_i32 = arith.constant 0 : i32
    %c0_i32_0 = arith.constant 0 : i32
    return %arg0, %c0_i32 : i32, i32
  }
  func.func @transform_1(%arg0: i32) -> (i32, i32) {
    %c0_i32 = arith.constant 0 : i32
    %c0_i32_0 = arith.constant 0 : i32
    %c0_i32_1 = arith.constant 0 : i32
    return %c0_i32, %c0_i32_0 : i32, i32
  }
  func.func @transform_2(%arg0: i32) -> i32 {
    %c0_i32 = arith.constant 0 : i32
    %c0_i32_0 = arith.constant 0 : i32
    return %c0_i32 : i32
  }
  func.func @transform_3(%arg0: i32) -> (i32, i32) {
    %c0_i32 = arith.constant 0 : i32
    %c0_i32_0 = arith.constant 0 : i32
    return %arg0, %c0_i32 : i32, i32
  }
}

</mosaic_0001>

<llo_original>
// kernel: tile.6
$region0: #{tile.6}
  #allocation0 [shape = 's32[1]{0}', space=sflag, size = 0x4, scoped, tag = 'scoped memory for tile.6']
  %s0 = inlined_call_operand.vmem [shape: f32[2], index: 0, kind: input, shape index: {}]
  %s1 = inlined_call_operand.vmem [shape: f32[128,2], index: 1, kind: output, shape index: {}]
  // Predicated region
  $region2: #{tile.6} parent=0 // pred_check
    _
  $region3: #{tile.6} parent=0 // pred_check_branch
    %3 = sbr.rel (0) target = $region5
  $region4: #{tile.6} parent=0 // pred_region
    _
  $region5: #{tile.6} parent=0 // pred_fallthru
    _
  %v4 = vld [vmem:[%s0] ss:$0 sm:$0xff]
  %5 = vst [vmem:[%s1] sm:$0xff] %v4
  %s6 = scalar_lea.vmem %s1, 8
  %7 = vst [vmem:[%s6] sm:$0xff] %v4
  %s8 = scalar_lea.vmem %s1, 16
  %9 = vst [vmem:[%s8] sm:$0xff] %v4
  %s10 = scalar_lea.vmem %s1, 24
  %11 = vst [vmem:[%s10] sm:$0xff] %v4
  %s12 = scalar_lea.vmem %s1, 32
  %13 = vst [vmem:[%s12] sm:$0xff] %v4
  %s14 = scalar_lea.vmem %s1, 40
  %15 = vst [vmem:[%s14] sm:$0xff] %v4
  %s16 = scalar_lea.vmem %s1, 48
  %17 = vst [vmem:[%s16] sm:$0xff] %v4
  %s18 = scalar_lea.vmem %s1, 56
  %19 = vst [vmem:[%s18] sm:$0xff] %v4
  %s20 = scalar_lea.vmem %s1, 64
  %21 = vst [vmem:[%s20] sm:$0xff] %v4
  %s22 = scalar_lea.vmem %s1, 72
  %23 = vst [vmem:[%s22] sm:$0xff] %v4
  %s24 = scalar_lea.vmem %s1, 80
  %25 = vst [vmem:[%s24] sm:$0xff] %v4
  %s26 = scalar_lea.vmem %s1, 88
  %27 = vst [vmem:[%s26] sm:$0xff] %v4
  %s28 = scalar_lea.vmem %s1, 96
  %29 = vst [vmem:[%s28] sm:$0xff] %v4
  %s30 = scalar_lea.vmem %s1, 104
  %31 = vst [vmem:[%s30] sm:$0xff] %v4
  %s32 = scalar_lea.vmem %s1, 112
  %33 = vst [vmem:[%s32] sm:$0xff] %v4
  %s34 = scalar_lea.vmem %s1, 120
  %35 = vst [vmem:[%s34] sm:$0xff] %v4

// kernel: mul.5
$region0: #{mul.5}
  %s0 = inlined_call_operand.vmem [shape: f32[128,2], index: 0, kind: input, shape index: {}]
  %s1 = inlined_call_operand.vmem [shape: f32[256], index: 1, kind: output, shape index: {}]
  $region1: #{mul.5} parent=0
    #allocation0 [shape = 'u8[4096]{0}', space=vmem, size = 0x1000, scoped, tag = 'scoped mem for output reshape']
    %v2 = vld [vmem:[%s0] sm:$0x1]
    %s3 = scalar_lea.vmem %s0, 63
    %v4 = vld [vmem:[%s3] sm:$0x2]
    %vm5 = vcmask 1041409
    %v6 = vsel %vm5, %v4, %v2
    %vm7 = vcmask 15360
    %8 = vst.msk [vmem:[#allocation0] sm:$0x3] %vm7, %v6
    %s9 = scalar_lea.vmem %s0, 63
    %v10 = vld [vmem:[%s9] sm:$0x1]
    %s11 = scalar_lea.vmem %s0, 126
    %v12 = vld [vmem:[%s11] sm:$0x2]
    %vm13 = vcmask 1041409
    %v14 = vsel %vm13, %v12, %v10
    %15 = vrot.lane.b32.xlu0 %v14, 126
    %v16 = vpop.permute.xlu0 %15
    %vm17 = vcmask 1048560
    %18 = vst.msk [vmem:[#allocation0] sm:$0x3] %vm17, %v16
    %s19 = scalar_lea.vmem %s0, 62
    %v20 = vld [vmem:[%s19] sm:$0x1]
    %s21 = scalar_lea.vmem %s0, 125
    %v22 = vld [vmem:[%s21] sm:$0x2]
    %vm23 = vcmask 1041409
    %v24 = vsel %vm23, %v22, %v20
    %25 = vrot.lane.b32.xlu0 %v24, 124
    %v26 = vpop.permute.xlu0 %25
    %vm27 = vcmask 1032160
    %28 = vst.msk [vmem:[#allocation0] sm:$0x3] %vm27, %v26
    %s29 = scalar_lea.vmem %s0, 61
    %v30 = vld [vmem:[%s29] sm:$0x1]
    %s31 = scalar_lea.vmem %s0, 124
    %v32 = vld [vmem:[%s31] sm:$0x2]
    %vm33 = vcmask 1041409
    %v34 = vsel %vm33, %v32, %v30
    %35 = vrot.lane.b32.xlu0 %v34, 122
    %v36 = vpop.permute.xlu0 %35
    %vm37 = vcmask 1015760
    %38 = vst.msk [vmem:[#allocation0] sm:$0x3] %vm37, %v36
    %s39 = scalar_lea.vmem %s0, 60
    %v40 = vld [vmem:[%s39] sm:$0x1]
    %s41 = scalar_lea.vmem %s0, 123
    %v42 = vld [vmem:[%s41] sm:$0x2]
    %vm43 = vcmask 1041409
    %v44 = vsel %vm43, %v42, %v40
    %45 = vrot.lane.b32.xlu0 %v44, 120
    %v46 = vpop.permute.xlu0 %45
    %vm47 = vcmask 999360
    %48 = vst.msk [vmem:[#allocation0] sm:$0x3] %vm47, %v46
    %s49 = scalar_lea.vmem %s0, 59
    %v50 = vld [vmem:[%s49] sm:$0x1]
    %s51 = scalar_lea.vmem %s0, 122
    %v52 = vld [vmem:[%s51] sm:$0x2]
    %vm53 = vcmask 1041409
    %v54 = vsel %vm53, %v52, %v50
    %55 = vrot.lane.b32.xlu0 %v54, 118
    %v56 = vpop.permute.xlu0 %55
    %vm57 = vcmask 982960
    %58 = vst.msk [vmem:[#allocation0] sm:$0x3] %vm57, %v56
    %s59 = scalar_lea.vmem %s0, 58
    %v60 = vld [vmem:[%s59] sm:$0x1]
    %s61 = scalar_lea.vmem %s0, 121
    %v62 = vld [vmem:[%s61] sm:$0x2]
    %vm63 = vcmask 1041409
    %v64 = vsel %vm63, %v62, %v60
    %65 = vrot.lane.b32.xlu0 %v64, 116
    %v66 = vpop.permute.xlu0 %65
    %vm67 = vcmask 966560
    %68 = vst.msk [vmem:[#allocation0] sm:$0x3] %vm67, %v66
    %s69 = scalar_lea.vmem %s0, 57
    %v70 = vld [vmem:[%s69] sm:$0x1]
    %s71 = scalar_lea.vmem %s0, 120
    %v72 = vld [vmem:[%s71] sm:$0x2]
    %vm73 = vcmask 1041409
    %v74 = vsel %vm73, %v72, %v70
    %75 = vrot.lane.b32.xlu0 %v74, 114
    %v76 = vpop.permute.xlu0 %75
    %vm77 = vcmask 950160
    %78 = vst.msk [vmem:[#allocation0] sm:$0x3] %vm77, %v76
    %s79 = scalar_lea.vmem %s0, 56
    %v80 = vld [vmem:[%s79] sm:$0x1]
    %s81 = scalar_lea.vmem %s0, 119
    %v82 = vld [vmem:[%s81] sm:$0x2]
    %vm83 = vcmask 1041409
    %v84 = vsel %vm83, %v82, %v80
    %85 = vrot.lane.b32.xlu0 %v84, 112
    %v86 = vpop.permute.xlu0 %85
    %vm87 = vcmask 933760
    %88 = vst.msk [vmem:[#allocation0] sm:$0x3] %vm87, %v86
    %s89 = scalar_lea.vmem %s0, 55
    %v90 = vld [vmem:[%s89] sm:$0x1]
    %s91 = scalar_lea.vmem %s0, 118
    %v92 = vld [vmem:[%s91] sm:$0x2]
    %vm93 = vcmask 1041409
    %v94 = vsel %vm93, %v92, %v90
    %95 = vrot.lane.b32.xlu0 %v94, 110
    %v96 = vpop.permute.xlu0 %95
    %vm97 = vcmask 917360
    %98 = vst.msk [vmem:[#allocation0] sm:$0x3] %vm97, %v96
    %s99 = scalar_lea.vmem %s0, 54
    %v100 = vld [vmem:[%s99] sm:$0x1]
    %s101 = scalar_lea.vmem %s0, 117
    %v102 = vld [vmem:[%s101] sm:$0x2]
    %vm103 = vcmask 1041409
    %v104 = vsel %vm103, %v102, %v100
    %105 = vrot.lane.b32.xlu0 %v104, 108
    %v106 = vpop.permute.xlu0 %105
    %vm107 = vcmask 900960
    %108 = vst.msk [vmem:[#allocation0] sm:$0x3] %vm107, %v106
    %s109 = scalar_lea.vmem %s0, 53
    %v110 = vld [vmem:[%s109] sm:$0x1]
    %s111 = scalar_lea.vmem %s0, 116
    %v112 = vld [vmem:[%s111] sm:$0x2]
    %vm113 = vcmask 1041409
    %v114 = vsel %vm113, %v112, %v110
    %115 = vrot.lane.b32.xlu0 %v114, 106
    %v116 = vpop.permute.xlu0 %115
    %vm117 = vcmask 884560
    %118 = vst.msk [vmem:[#allocation0] sm:$0x3] %vm117, %v116
    %s119 = scalar_lea.vmem %s0, 52
    %v120 = vld [vmem:[%s119] sm:$0x1]
    %s121 = scalar_lea.vmem %s0, 115
    %v122 = vld [vmem:[%s121] sm:$0x2]
    %vm123 = vcmask 1041409
    %v124 = vsel %vm123, %v122, %v120
    %125 = vrot.lane.b32.xlu0 %v124, 104
    %v126 = vpop.permute.xlu0 %125
    %vm127 = vcmask 868160
    %128 = vst.msk [vmem:[#allocation0] sm:$0x3] %vm127, %v126
    %s129 = scalar_lea.vmem %s0, 51
    %v130 = vld [vmem:[%s129] sm:$0x1]
    %s131 = scalar_lea.vmem %s0, 114
    %v132 = vld [vmem:[%s131] sm:$0x2]
    %vm133 = vcmask 1041409
    %v134 = vsel %vm133, %v132, %v130
    %135 = vrot.lane.b32.xlu0 %v134, 102
    %v136 = vpop.permute.xlu0 %135
    %vm137 = vcmask 851760
    %138 = vst.msk [vmem:[#allocation0] sm:$0x3] %vm137, %v136
    %s139 = scalar_lea.vmem %s0, 50
    %v140 = vld [vmem:[%s139] sm:$0x1]
    %s141 = scalar_lea.vmem %s0, 113
    %v142 = vld [vmem:[%s141] sm:$0x2]
    %vm143 = vcmask 1041409
    %v144 = vsel %vm143, %v142, %v140
    %145 = vrot.lane.b32.xlu0 %v144, 100
    %v146 = vpop.permute.xlu0 %145
    %vm147 = vcmask 835360
    %148 = vst.msk [vmem:[#allocation0] sm:$0x3] %vm147, %v146
    %s149 = scalar_lea.vmem %s0, 49
    %v150 = vld [vmem:[%s149] sm:$0x1]
    %s151 = scalar_lea.vmem %s0, 112
    %v152 = vld [vmem:[%s151] sm:$0x2]
    %vm153 = vcmask 1041409
    %v154 = vsel %vm153, %v152, %v150
    %155 = vrot.lane.b32.xlu0 %v154, 98
    %v156 = vpop.permute.xlu0 %155
    %vm157 = vcmask 818960
    %158 = vst.msk [vmem:[#allocation0] sm:$0x3] %vm157, %v156
    %s159 = scalar_lea.vmem %s0, 48
    %v160 = vld [vmem:[%s159] sm:$0x1]
    %s161 = scalar_lea.vmem %s0, 111
    %v162 = vld [vmem:[%s161] sm:$0x2]
    %vm163 = vcmask 1041409
    %v164 = vsel %vm163, %v162, %v160
    %165 = vrot.lane.b32.xlu0 %v164, 96
    %v166 = vpop.permute.xlu0 %165
    %vm167 = vcmask 802560
    %168 = vst.msk [vmem:[#allocation0] sm:$0x3] %vm167, %v166
    %s169 = scalar_lea.vmem %s0, 47
    %v170 = vld [vmem:[%s169] sm:$0x1]
    %s171 = scalar_lea.vmem %s0, 110
    %v172 = vld [vmem:[%s171] sm:$0x2]
    %vm173 = vcmask 1041409
    %v174 = vsel %vm173, %v172, %v170
    %175 = vrot.lane.b32.xlu0 %v174, 94
    %v176 = vpop.permute.xlu0 %175
    %vm177 = vcmask 786160
    %178 = vst.msk [vmem:[#allocation0] sm:$0x3] %vm177, %v176
    %s179 = scalar_lea.vmem %s0, 46
    %v180 = vld [vmem:[%s179] sm:$0x1]
    %s181 = scalar_lea.vmem %s0, 109
    %v182 = vld [vmem:[%s181] sm:$0x2]
    %vm183 = vcmask 1041409
    %v184 = vsel %vm183, %v182, %v180
    %185 = vrot.lane.b32.xlu0 %v184, 92
    %v186 = vpop.permute.xlu0 %185
    %vm187 = vcmask 769760
    %188 = vst.msk [vmem:[#allocation0] sm:$0x3] %vm187, %v186
    %s189 = scalar_lea.vmem %s0, 45
    %v190 = vld [vmem:[%s189] sm:$0x1]
    %s191 = scalar_lea.vmem %s0, 108
    %v192 = vld [vmem:[%s191] sm:$0x2]
    %vm193 = vcmask 1041409
    %v194 = vsel %vm193, %v192, %v190
    %195 = vrot.lane.b32.xlu0 %v194, 90
    %v196 = vpop.permute.xlu0 %195
    %vm197 = vcmask 753360
    %198 = vst.msk [vmem:[#allocation0] sm:$0x3] %vm197, %v196
    %s199 = scalar_lea.vmem %s0, 44
    %v200 = vld [vmem:[%s199] sm:$0x1]
    %s201 = scalar_lea.vmem %s0, 107
    %v202 = vld [vmem:[%s201] sm:$0x2]
    %vm203 = vcmask 1041409
    %v204 = vsel %vm203, %v202, %v200
    %205 = vrot.lane.b32.xlu0 %v204, 88
    %v206 = vpop.permute.xlu0 %205
    %vm207 = vcmask 736960
    %208 = vst.msk [vmem:[#allocation0] sm:$0x3] %vm207, %v206
    %s209 = scalar_lea.vmem %s0, 43
    %v210 = vld [vmem:[%s209] sm:$0x1]
    %s211 = scalar_lea.vmem %s0, 106
    %v212 = vld [vmem:[%s211] sm:$0x2]
    %vm213 = vcmask 1041409
    %v214 = vsel %vm213, %v212, %v210
    %215 = vrot.lane.b32.xlu0 %v214, 86
    %v216 = vpop.permute.xlu0 %215
    %vm217 = vcmask 720560
    %218 = vst.msk [vmem:[#allocation0] sm:$0x3] %vm217, %v216
    %s219 = scalar_lea.vmem %s0, 42
    %v220 = vld [vmem:[%s219] sm:$0x1]
    %s221 = scalar_lea.vmem %s0, 105
    %v222 = vld [vmem:[%s221] sm:$0x2]
    %vm223 = vcmask 1041409
    %v224 = vsel %vm223, %v222, %v220
    %225 = vrot.lane.b32.xlu0 %v224, 84
    %v226 = vpop.permute.xlu0 %225
    %vm227 = vcmask 704160
    %228 = vst.msk [vmem:[#allocation0] sm:$0x3] %vm227, %v226
    %s229 = scalar_lea.vmem %s0, 41
    %v230 = vld [vmem:[%s229] sm:$0x1]
    %s231 = scalar_lea.vmem %s0, 104
    %v232 = vld [vmem:[%s231] sm:$0x2]
    %vm233 = vcmask 1041409
    %v234 = vsel %vm233, %v232, %v230
    %235 = vrot.lane.b32.xlu0 %v234, 82
    %v236 = vpop.permute.xlu0 %235
    %vm237 = vcmask 687760
    %238 = vst.msk [vmem:[#allocation0] sm:$0x3] %vm237, %v236
    %s239 = scalar_lea.vmem %s0, 40
    %v240 = vld [vmem:[%s239] sm:$0x1]
    %s241 = scalar_lea.vmem %s0, 103
    %v242 = vld [vmem:[%s241] sm:$0x2]
    %vm243 = vcmask 1041409
    %v244 = vsel %vm243, %v242, %v240
    %245 = vrot.lane.b32.xlu0 %v244, 80
    %v246 = vpop.permute.xlu0 %245
    %vm247 = vcmask 671360
    %248 = vst.msk [vmem:[#allocation0] sm:$0x3] %vm247, %v246
    %s249 = scalar_lea.vmem %s0, 39
    %v250 = vld [vmem:[%s249] sm:$0x1]
    %s251 = scalar_lea.vmem %s0, 102
    %v252 = vld [vmem:[%s251] sm:$0x2]
    %vm253 = vcmask 1041409
    %v254 = vsel %vm253, %v252, %v250
    %255 = vrot.lane.b32.xlu0 %v254, 78
    %v256 = vpop.permute.xlu0 %255
    %vm257 = vcmask 654960
    %258 = vst.msk [vmem:[#allocation0] sm:$0x3] %vm257, %v256
    %s259 = scalar_lea.vmem %s0, 38
    %v260 = vld [vmem:[%s259] sm:$0x1]
    %s261 = scalar_lea.vmem %s0, 101
    %v262 = vld [vmem:[%s261] sm:$0x2]
    %vm263 = vcmask 1041409
    %v264 = vsel %vm263, %v262, %v260
    %265 = vrot.lane.b32.xlu0 %v264, 76
    %v266 = vpop.permute.xlu0 %265
    %vm267 = vcmask 638560
    %268 = vst.msk [vmem:[#allocation0] sm:$0x3] %vm267, %v266
    %s269 = scalar_lea.vmem %s0, 37
    %v270 = vld [vmem:[%s269] sm:$0x1]
    %s271 = scalar_lea.vmem %s0, 100
    %v272 = vld [vmem:[%s271] sm:$0x2]
    %vm273 = vcmask 1041409
    %v274 = vsel %vm273, %v272, %v270
    %275 = vrot.lane.b32.xlu0 %v274, 74
    %v276 = vpop.permute.xlu0 %275
    %vm277 = vcmask 622160
    %278 = vst.msk [vmem:[#allocation0] sm:$0x3] %vm277, %v276
    %s279 = scalar_lea.vmem %s0, 36
    %v280 = vld [vmem:[%s279] sm:$0x1]
    %s281 = scalar_lea.vmem %s0, 99
    %v282 = vld [vmem:[%s281] sm:$0x2]
    %vm283 = vcmask 1041409
    %v284 = vsel %vm283, %v282, %v280
    %285 = vrot.lane.b32.xlu0 %v284, 72
    %v286 = vpop.permute.xlu0 %285
    %vm287 = vcmask 605760
    %288 = vst.msk [vmem:[#allocation0] sm:$0x3] %vm287, %v286
    %s289 = scalar_lea.vmem %s0, 35
    %v290 = vld [vmem:[%s289] sm:$0x1]
    %s291 = scalar_lea.vmem %s0, 98
    %v292 = vld [vmem:[%s291] sm:$0x2]
    %vm293 = vcmask 1041409
    %v294 = vsel %vm293, %v292, %v290
    %295 = vrot.lane.b32.xlu0 %v294, 70
    %v296 = vpop.permute.xlu0 %295
    %vm297 = vcmask 589360
    %298 = vst.msk [vmem:[#allocation0] sm:$0x3] %vm297, %v296
    %s299 = scalar_lea.vmem %s0, 34
    %v300 = vld [vmem:[%s299] sm:$0x1]
    %s301 = scalar_lea.vmem %s0, 97
    %v302 = vld [vmem:[%s301] sm:$0x2]
    %vm303 = vcmask 1041409
    %v304 = vsel %vm303, %v302, %v300
    %305 = vrot.lane.b32.xlu0 %v304, 68
    %v306 = vpop.permute.xlu0 %305
    %vm307 = vcmask 572960
    %308 = vst.msk [vmem:[#allocation0] sm:$0x3] %vm307, %v306
    %s309 = scalar_lea.vmem %s0, 33
    %v310 = vld [vmem:[%s309] sm:$0x1]
    %s311 = scalar_lea.vmem %s0, 96
    %v312 = vld [vmem:[%s311] sm:$0x2]
    %vm313 = vcmask 1041409
    %v314 = vsel %vm313, %v312, %v310
    %315 = vrot.lane.b32.xlu0 %v314, 66
    %v316 = vpop.permute.xlu0 %315
    %vm317 = vcmask 556560
    %318 = vst.msk [vmem:[#allocation0] sm:$0x3] %vm317, %v316
    %s319 = scalar_lea.vmem %s0, 32
    %v320 = vld [vmem:[%s319] sm:$0x1]
    %s321 = scalar_lea.vmem %s0, 95
    %v322 = vld [vmem:[%s321] sm:$0x2]
    %vm323 = vcmask 1041409
    %v324 = vsel %vm323, %v322, %v320
    %325 = vrot.lane.b32.xlu0 %v324, 64
    %v326 = vpop.permute.xlu0 %325
    %vm327 = vcmask 540160
    %328 = vst.msk [vmem:[#allocation0] sm:$0x3] %vm327, %v326
    %s329 = scalar_lea.vmem %s0, 31
    %v330 = vld [vmem:[%s329] sm:$0x1]
    %s331 = scalar_lea.vmem %s0, 94
    %v332 = vld [vmem:[%s331] sm:$0x2]
    %vm333 = vcmask 1041409
    %v334 = vsel %vm333, %v332, %v330
    %335 = vrot.lane.b32.xlu0 %v334, 62
    %v336 = vpop.permute.xlu0 %335
    %vm337 = vcmask 523760
    %338 = vst.msk [vmem:[#allocation0] sm:$0x3] %vm337, %v336
    %s339 = scalar_lea.vmem %s0, 30
    %v340 = vld [vmem:[%s339] sm:$0x1]
    %s341 = scalar_lea.vmem %s0, 93
    %v342 = vld [vmem:[%s341] sm:$0x2]
    %vm343 = vcmask 1041409
    %v344 = vsel %vm343, %v342, %v340
    %345 = vrot.lane.b32.xlu0 %v344, 60
    %v346 = vpop.permute.xlu0 %345
    %vm347 = vcmask 507360
    %348 = vst.msk [vmem:[#allocation0] sm:$0x3] %vm347, %v346
    %s349 = scalar_lea.vmem %s0, 29
    %v350 = vld [vmem:[%s349] sm:$0x1]
    %s351 = scalar_lea.vmem %s0, 92
    %v352 = vld [vmem:[%s351] sm:$0x2]
    %vm353 = vcmask 1041409
    %v354 = vsel %vm353, %v352, %v350
    %355 = vrot.lane.b32.xlu0 %v354, 58
    %v356 = vpop.permute.xlu0 %355
    %vm357 = vcmask 490960
    %358 = vst.msk [vmem:[#allocation0] sm:$0x3] %vm357, %v356
    %s359 = scalar_lea.vmem %s0, 28
    %v360 = vld [vmem:[%s359] sm:$0x1]
    %s361 = scalar_lea.vmem %s0, 91
    %v362 = vld [vmem:[%s361] sm:$0x2]
    %vm363 = vcmask 1041409
    %v364 = vsel %vm363, %v362, %v360
    %365 = vrot.lane.b32.xlu0 %v364, 56
    %v366 = vpop.permute.xlu0 %365
    %vm367 = vcmask 474560
    %368 = vst.msk [vmem:[#allocation0] sm:$0x3] %vm367, %v366
    %s369 = scalar_lea.vmem %s0, 27
    %v370 = vld [vmem:[%s369] sm:$0x1]
    %s371 = scalar_lea.vmem %s0, 90
    %v372 = vld [vmem:[%s371] sm:$0x2]
    %vm373 = vcmask 1041409
    %v374 = vsel %vm373, %v372, %v370
    %375 = vrot.lane.b32.xlu0 %v374, 54
    %v376 = vpop.permute.xlu0 %375
    %vm377 = vcmask 458160
    %378 = vst.msk [vmem:[#allocation0] sm:$0x3] %vm377, %v376
    %s379 = scalar_lea.vmem %s0, 26
    %v380 = vld [vmem:[%s379] sm:$0x1]
    %s381 = scalar_lea.vmem %s0, 89
    %v382 = vld [vmem:[%s381] sm:$0x2]
    %vm383 = vcmask 1041409
    %v384 = vsel %vm383, %v382, %v380
    %385 = vrot.lane.b32.xlu0 %v384, 52
    %v386 = vpop.permute.xlu0 %385
    %vm387 = vcmask 441760
    %388 = vst.msk [vmem:[#allocation0] sm:$0x3] %vm387, %v386
    %s389 = scalar_lea.vmem %s0, 25
    %v390 = vld [vmem:[%s389] sm:$0x1]
    %s391 = scalar_lea.vmem %s0, 88
    %v392 = vld [vmem:[%s391] sm:$0x2]
    %vm393 = vcmask 1041409
    %v394 = vsel %vm393, %v392, %v390
    %395 = vrot.lane.b32.xlu0 %v394, 50
    %v396 = vpop.permute.xlu0 %395
    %vm397 = vcmask 425360
    %398 = vst.msk [vmem:[#allocation0] sm:$0x3] %vm397, %v396
    %s399 = scalar_lea.vmem %s0, 24
    %v400 = vld [vmem:[%s399] sm:$0x1]
    %s401 = scalar_lea.vmem %s0, 87
    %v402 = vld [vmem:[%s401] sm:$0x2]
    %vm403 = vcmask 1041409
    %v404 = vsel %vm403, %v402, %v400
    %405 = vrot.lane.b32.xlu0 %v404, 48
    %v406 = vpop.permute.xlu0 %405
    %vm407 = vcmask 408960
    %408 = vst.msk [vmem:[#allocation0] sm:$0x3] %vm407, %v406
    %s409 = scalar_lea.vmem %s0, 23
    %v410 = vld [vmem:[%s409] sm:$0x1]
    %s411 = scalar_lea.vmem %s0, 86
    %v412 = vld [vmem:[%s411] sm:$0x2]
    %vm413 = vcmask 1041409
    %v414 = vsel %vm413, %v412, %v410
    %415 = vrot.lane.b32.xlu0 %v414, 46
    %v416 = vpop.permute.xlu0 %415
    %vm417 = vcmask 392560
    %418 = vst.msk [vmem:[#allocation0] sm:$0x3] %vm417, %v416
    %s419 = scalar_lea.vmem %s0, 22
    %v420 = vld [vmem:[%s419] sm:$0x1]
    %s421 = scalar_lea.vmem %s0, 85
    %v422 = vld [vmem:[%s421] sm:$0x2]
    %vm423 = vcmask 1041409
    %v424 = vsel %vm423, %v422, %v420
    %425 = vrot.lane.b32.xlu0 %v424, 44
    %v426 = vpop.permute.xlu0 %425
    %vm427 = vcmask 376160
    %428 = vst.msk [vmem:[#allocation0] sm:$0x3] %vm427, %v426
    %s429 = scalar_lea.vmem %s0, 21
    %v430 = vld [vmem:[%s429] sm:$0x1]
    %s431 = scalar_lea.vmem %s0, 84
    %v432 = vld [vmem:[%s431] sm:$0x2]
    %vm433 = vcmask 1041409
    %v434 = vsel %vm433, %v432, %v430
    %435 = vrot.lane.b32.xlu0 %v434, 42
    %v436 = vpop.permute.xlu0 %435
    %vm437 = vcmask 359760
    %438 = vst.msk [vmem:[#allocation0] sm:$0x3] %vm437, %v436
    %s439 = scalar_lea.vmem %s0, 20
    %v440 = vld [vmem:[%s439] sm:$0x1]
    %s441 = scalar_lea.vmem %s0, 83
    %v442 = vld [vmem:[%s441] sm:$0x2]
    %vm443 = vcmask 1041409
    %v444 = vsel %vm443, %v442, %v440
    %445 = vrot.lane.b32.xlu0 %v444, 40
    %v446 = vpop.permute.xlu0 %445
    %vm447 = vcmask 343360
    %448 = vst.msk [vmem:[#allocation0] sm:$0x3] %vm447, %v446
    %s449 = scalar_lea.vmem %s0, 19
    %v450 = vld [vmem:[%s449] sm:$0x1]
    %s451 = scalar_lea.vmem %s0, 82
    %v452 = vld [vmem:[%s451] sm:$0x2]
    %vm453 = vcmask 1041409
    %v454 = vsel %vm453, %v452, %v450
    %455 = vrot.lane.b32.xlu0 %v454, 38
    %v456 = vpop.permute.xlu0 %455
    %vm457 = vcmask 326960
    %458 = vst.msk [vmem:[#allocation0] sm:$0x3] %vm457, %v456
    %s459 = scalar_lea.vmem %s0, 18
    %v460 = vld [vmem:[%s459] sm:$0x1]
    %s461 = scalar_lea.vmem %s0, 81
    %v462 = vld [vmem:[%s461] sm:$0x2]
    %vm463 = vcmask 1041409
    %v464 = vsel %vm463, %v462, %v460
    %465 = vrot.lane.b32.xlu0 %v464, 36
    %v466 = vpop.permute.xlu0 %465
    %vm467 = vcmask 310560
    %468 = vst.msk [vmem:[#allocation0] sm:$0x3] %vm467, %v466
    %s469 = scalar_lea.vmem %s0, 17
    %v470 = vld [vmem:[%s469] sm:$0x1]
    %s471 = scalar_lea.vmem %s0, 80
    %v472 = vld [vmem:[%s471] sm:$0x2]
    %vm473 = vcmask 1041409
    %v474 = vsel %vm473, %v472, %v470
    %475 = vrot.lane.b32.xlu0 %v474, 34
    %v476 = vpop.permute.xlu0 %475
    %vm477 = vcmask 294160
    %478 = vst.msk [vmem:[#allocation0] sm:$0x3] %vm477, %v476
    %s479 = scalar_lea.vmem %s0, 16
    %v480 = vld [vmem:[%s479] sm:$0x1]
    %s481 = scalar_lea.vmem %s0, 79
    %v482 = vld [vmem:[%s481] sm:$0x2]
    %vm483 = vcmask 1041409
    %v484 = vsel %vm483, %v482, %v480
    %485 = vrot.lane.b32.xlu0 %v484, 32
    %v486 = vpop.permute.xlu0 %485
    %vm487 = vcmask 277760
    %488 = vst.msk [vmem:[#allocation0] sm:$0x3] %vm487, %v486
    %s489 = scalar_lea.vmem %s0, 15
    %v490 = vld [vmem:[%s489] sm:$0x1]
    %s491 = scalar_lea.vmem %s0, 78
    %v492 = vld [vmem:[%s491] sm:$0x2]
    %vm493 = vcmask 1041409
    %v494 = vsel %vm493, %v492, %v490
    %495 = vrot.lane.b32.xlu0 %v494, 30
    %v496 = vpop.permute.xlu0 %495
    %vm497 = vcmask 261360
    %498 = vst.msk [vmem:[#allocation0] sm:$0x3] %vm497, %v496
    %s499 = scalar_lea.vmem %s0, 14
    %v500 = vld [vmem:[%s499] sm:$0x1]
    %s501 = scalar_lea.vmem %s0, 77
    %v502 = vld [vmem:[%s501] sm:$0x2]
    %vm503 = vcmask 1041409
    %v504 = vsel %vm503, %v502, %v500
    %505 = vrot.lane.b32.xlu0 %v504, 28
    %v506 = vpop.permute.xlu0 %505
    %vm507 = vcmask 244960
    %508 = vst.msk [vmem:[#allocation0] sm:$0x3] %vm507, %v506
    %s509 = scalar_lea.vmem %s0, 13
    %v510 = vld [vmem:[%s509] sm:$0x1]
    %s511 = scalar_lea.vmem %s0, 76
    %v512 = vld [vmem:[%s511] sm:$0x2]
    %vm513 = vcmask 1041409
    %v514 = vsel %vm513, %v512, %v510
    %515 = vrot.lane.b32.xlu0 %v514, 26
    %v516 = vpop.permute.xlu0 %515
    %vm517 = vcmask 228560
    %518 = vst.msk [vmem:[#allocation0] sm:$0x3] %vm517, %v516
    %s519 = scalar_lea.vmem %s0, 12
    %v520 = vld [vmem:[%s519] sm:$0x1]
    %s521 = scalar_lea.vmem %s0, 75
    %v522 = vld [vmem:[%s521] sm:$0x2]
    %vm523 = vcmask 1041409
    %v524 = vsel %vm523, %v522, %v520
    %525 = vrot.lane.b32.xlu0 %v524, 24
    %v526 = vpop.permute.xlu0 %525
    %vm527 = vcmask 212160
    %528 = vst.msk [vmem:[#allocation0] sm:$0x3] %vm527, %v526
    %s529 = scalar_lea.vmem %s0, 11
    %v530 = vld [vmem:[%s529] sm:$0x1]
    %s531 = scalar_lea.vmem %s0, 74
    %v532 = vld [vmem:[%s531] sm:$0x2]
    %vm533 = vcmask 1041409
    %v534 = vsel %vm533, %v532, %v530
    %535 = vrot.lane.b32.xlu0 %v534, 22
    %v536 = vpop.permute.xlu0 %535
    %vm537 = vcmask 195760
    %538 = vst.msk [vmem:[#allocation0] sm:$0x3] %vm537, %v536
    %s539 = scalar_lea.vmem %s0, 10
    %v540 = vld [vmem:[%s539] sm:$0x1]
    %s541 = scalar_lea.vmem %s0, 73
    %v542 = vld [vmem:[%s541] sm:$0x2]
    %vm543 = vcmask 1041409
    %v544 = vsel %vm543, %v542, %v540
    %545 = vrot.lane.b32.xlu0 %v544, 20
    %v546 = vpop.permute.xlu0 %545
    %vm547 = vcmask 179360
    %548 = vst.msk [vmem:[#allocation0] sm:$0x3] %vm547, %v546
    %s549 = scalar_lea.vmem %s0, 9
    %v550 = vld [vmem:[%s549] sm:$0x1]
    %s551 = scalar_lea.vmem %s0, 72
    %v552 = vld [vmem:[%s551] sm:$0x2]
    %vm553 = vcmask 1041409
    %v554 = vsel %vm553, %v552, %v550
    %555 = vrot.lane.b32.xlu0 %v554, 18
    %v556 = vpop.permute.xlu0 %555
    %vm557 = vcmask 162960
    %558 = vst.msk [vmem:[#allocation0] sm:$0x3] %vm557, %v556
    %s559 = scalar_lea.vmem %s0, 8
    %v560 = vld [vmem:[%s559] sm:$0x1]
    %s561 = scalar_lea.vmem %s0, 71
    %v562 = vld [vmem:[%s561] sm:$0x2]
    %vm563 = vcmask 1041409
    %v564 = vsel %vm563, %v562, %v560
    %565 = vrot.lane.b32.xlu0 %v564, 16
    %v566 = vpop.permute.xlu0 %565
    %vm567 = vcmask 146560
    %568 = vst.msk [vmem:[#allocation0] sm:$0x3] %vm567, %v566
    %s569 = scalar_lea.vmem %s0, 7
    %v570 = vld [vmem:[%s569] sm:$0x1]
    %s571 = scalar_lea.vmem %s0, 70
    %v572 = vld [vmem:[%s571] sm:$0x2]
    %vm573 = vcmask 1041409
    %v574 = vsel %vm573, %v572, %v570
    %575 = vrot.lane.b32.xlu0 %v574, 14
    %v576 = vpop.permute.xlu0 %575
    %vm577 = vcmask 130160
    %578 = vst.msk [vmem:[#allocation0] sm:$0x3] %vm577, %v576
    %s579 = scalar_lea.vmem %s0, 6
    %v580 = vld [vmem:[%s579] sm:$0x1]
    %s581 = scalar_lea.vmem %s0, 69
    %v582 = vld [vmem:[%s581] sm:$0x2]
    %vm583 = vcmask 1041409
    %v584 = vsel %vm583, %v582, %v580
    %585 = vrot.lane.b32.xlu0 %v584, 12
    %v586 = vpop.permute.xlu0 %585
    %vm587 = vcmask 113760
    %588 = vst.msk [vmem:[#allocation0] sm:$0x3] %vm587, %v586
    %s589 = scalar_lea.vmem %s0, 5
    %v590 = vld [vmem:[%s589] sm:$0x1]
    %s591 = scalar_lea.vmem %s0, 68
    %v592 = vld [vmem:[%s591] sm:$0x2]
    %vm593 = vcmask 1041409
    %v594 = vsel %vm593, %v592, %v590
    %595 = vrot.lane.b32.xlu0 %v594, 10
    %v596 = vpop.permute.xlu0 %595
    %vm597 = vcmask 97360
    %598 = vst.msk [vmem:[#allocation0] sm:$0x3] %vm597, %v596
    %s599 = scalar_lea.vmem %s0, 4
    %v600 = vld [vmem:[%s599] sm:$0x1]
    %s601 = scalar_lea.vmem %s0, 67
    %v602 = vld [vmem:[%s601] sm:$0x2]
    %vm603 = vcmask 1041409
    %v604 = vsel %vm603, %v602, %v600
    %605 = vrot.lane.b32.xlu0 %v604, 8
    %v606 = vpop.permute.xlu0 %605
    %vm607 = vcmask 80960
    %608 = vst.msk [vmem:[#allocation0] sm:$0x3] %vm607, %v606
    %s609 = scalar_lea.vmem %s0, 3
    %v610 = vld [vmem:[%s609] sm:$0x1]
    %s611 = scalar_lea.vmem %s0, 66
    %v612 = vld [vmem:[%s611] sm:$0x2]
    %vm613 = vcmask 1041409
    %v614 = vsel %vm613, %v612, %v610
    %615 = vrot.lane.b32.xlu0 %v614, 6
    %v616 = vpop.permute.xlu0 %615
    %vm617 = vcmask 64560
    %618 = vst.msk [vmem:[#allocation0] sm:$0x3] %vm617, %v616
    %s619 = scalar_lea.vmem %s0, 2
    %v620 = vld [vmem:[%s619] sm:$0x1]
    %s621 = scalar_lea.vmem %s0, 65
    %v622 = vld [vmem:[%s621] sm:$0x2]
    %vm623 = vcmask 1041409
    %v624 = vsel %vm623, %v622, %v620
    %625 = vrot.lane.b32.xlu0 %v624, 4
    %v626 = vpop.permute.xlu0 %625
    %vm627 = vcmask 48160
    %628 = vst.msk [vmem:[#allocation0] sm:$0x3] %vm627, %v626
    %s629 = scalar_lea.vmem %s0, 1
    %v630 = vld [vmem:[%s629] sm:$0x1]
    %s631 = scalar_lea.vmem %s0, 64
    %v632 = vld [vmem:[%s631] sm:$0x2]
    %vm633 = vcmask 1041409
    %v634 = vsel %vm633, %v632, %v630
    %635 = vrot.lane.b32.xlu0 %v634, 2
    %v636 = vpop.permute.xlu0 %635
    %vm637 = vcmask 31760
    %638 = vst.msk [vmem:[#allocation0] sm:$0x3] %vm637, %v636
    %s640 = sshll.u32 1, 2
    %s641 = ssub.s32 %s640, 1
    %v643 = vld [vmem:[#allocation0] sm:%s641]
    %s644 = sshll.u32 1, 2
    %s645 = ssub.s32 %s644, 1
    %646 = vst [vmem:[%s1] sm:%s645] %v643

// kernel: nn_original_gravity_forward.1
$region0: #{nn_original_gravity_forward.1}
  #allocation0 [shape = 'u32[]', space=smem, size = 0x4, offset = 0x4, fixed_abs, tag = 'smem constant byte address 0x4 - core index']
  #allocation1 [shape = 'u32[144,128]{1,0:T(1,128)}', space=vmem, size = 0x12000, scoped, tag = 'internal scratch']
  #allocation2 [shape = 'f32[1]{0:T(128)S(6)}', space=smem, size = 0x200, scoped, tag = 'scoped memory for nn_original_gravity_forward.1']
  %s0 = inlined_call_operand.vmem [shape: f32[16,256], index: 0, kind: input, shape index: {}]
  %s1 = inlined_call_operand.vmem [shape: f32[256,128], index: 1, kind: input, shape index: {}]
  %s2 = inlined_call_operand.<no memory space> [shape: f32[1], index: 2, kind: input, shape index: {}]
  %s3 = inlined_call_operand.vmem [shape: f32[16,128], index: 3, kind: output, shape index: {}]
  %s4 = sld [smem:[#allocation0]]
  $region45: #{nn_original_gravity_forward.1} parent=0
    _
  %s6 = ssub.s32 1, %s4
  %s7 = scalar_select 0, %s6, %s4
  %8 = sst [smem:[#allocation2]] %s2
  loop: start=0, step=1, limit=4
  $region2: #{nn_original_gravity_forward.1} parent=0 // loop_pre_header
    _
  $region3: #{nn_original_gravity_forward.1} parent=0 // loop_header
    %s10 = sphi 0, %s14
    %p11 = scmp.ge.s32.totalorder %s10, 4
    %s20 = sphi 0, %s22
    %s23 = sphi 0, %s20
    %s24 = sphi 0, %s23
    %s40 = sphi 0, %s24
    %s44 = sphi 0, %s44
    %s46 = sphi 0, %s44
    %s47 = sphi 0, %s46
    %s61 = sphi 0, %s47
    %s65 = sphi 0, %s65
    %s67 = sphi 0, %s65
    %s68 = sphi 0, %s67
    %s82 = sphi 0, %s68
    %s88 = sphi 0, %s90
    %s91 = sphi 0, %s88
    %s92 = sphi 0, %s91
    %s108 = sphi 0, %s92
  $region4: #{nn_original_gravity_forward.1} parent=0 // loop_header_branch
    %13 = sbr.rel (%p11) target = $region8
  $region5: #{nn_original_gravity_forward.1} parent=0 // loop_body
    %s15 = ssub.s32 %s10, 1
    %s16 = ssub.s32 %s10, 2
    %s17 = sadd.s32 %s10, 1
    %s18 = ssub.s32 %s10, %s17
    %p19 = scmp.eq.s32.totalorder %s18, 0
    %s21 = sadd.s32 %s20, 1
    %s22 = scalar_select %p19, %s20, %s21
    %p25 = pneg %p19
    %p26 = scmp.eq.s32.totalorder %s10, 1
    %p27 = por %p25, %p26
    %p28 = scmp.ne.s32.totalorder %s20, %s23
    %p29 = scmp.eq.s32.totalorder %s10, 0
    %p30 = por %p28, %p29
    %p31 = scmp.ne.s32.totalorder %s20, %s23
    %p32 = scmp.eq.s32.totalorder %s15, 1
    %p33 = por %p31, %p32
    %p34 = scmp.ne.s32.totalorder %s23, %s24
    %p35 = scmp.eq.s32.totalorder %s15, 0
    %p36 = por %p34, %p35
    %p37 = scmp.ne.s32.totalorder %s23, %s24
    %p38 = scmp.eq.s32.totalorder %s16, 1
    %p39 = por %p37, %p38
    %p41 = scmp.ne.s32.totalorder %s24, %s40
    %p42 = scmp.eq.s32.totalorder %s16, 0
    %p43 = por %p41, %p42
    %s45 = sadd.s32 %s44, 1
    %p48 = scmp.eq.s32.totalorder %s10, 1
    %p49 = scmp.ne.s32.totalorder %s44, %s46
    %p50 = scmp.eq.s32.totalorder %s10, 0
    %p51 = por %p49, %p50
    %p52 = scmp.ne.s32.totalorder %s44, %s46
    %p53 = scmp.eq.s32.totalorder %s15, 1
    %p54 = por %p52, %p53
    %p55 = scmp.ne.s32.totalorder %s46, %s47
    %p56 = scmp.eq.s32.totalorder %s15, 0
    %p57 = por %p55, %p56
    %p58 = scmp.ne.s32.totalorder %s46, %s47
    %p59 = scmp.eq.s32.totalorder %s16, 1
    %p60 = por %p58, %p59
    %p62 = scmp.ne.s32.totalorder %s47, %s61
    %p63 = scmp.eq.s32.totalorder %s16, 0
    %p64 = por %p62, %p63
    %s66 = sadd.s32 %s65, 1
    %p69 = scmp.eq.s32.totalorder %s10, 1
    %p70 = scmp.ne.s32.totalorder %s65, %s67
    %p71 = scmp.eq.s32.totalorder %s10, 0
    %p72 = por %p70, %p71
    %p73 = scmp.ne.s32.totalorder %s65, %s67
    %p74 = scmp.eq.s32.totalorder %s15, 1
    %p75 = por %p73, %p74
    %p76 = scmp.ne.s32.totalorder %s67, %s68
    %p77 = scmp.eq.s32.totalorder %s15, 0
    %p78 = por %p76, %p77
    %p79 = scmp.ne.s32.totalorder %s67, %s68
    %p80 = scmp.eq.s32.totalorder %s16, 1
    %p81 = por %p79, %p80
    %p83 = scmp.ne.s32.totalorder %s68, %s82
    %p84 = scmp.eq.s32.totalorder %s16, 0
    %p85 = por %p83, %p84
    %s86 = ssub.s32 %s10, %s17
    %p87 = scmp.eq.s32.totalorder %s86, 0
    %s89 = sadd.s32 %s88, 1
    %s90 = scalar_select %p87, %s88, %s89
    %p93 = pneg %p87
    %p94 = scmp.eq.s32.totalorder %s10, 1
    %p95 = por %p93, %p94
    %p96 = scmp.ne.s32.totalorder %s88, %s91
    %p97 = scmp.eq.s32.totalorder %s10, 0
    %p98 = por %p96, %p97
    %p99 = scmp.ne.s32.totalorder %s88, %s91
    %p100 = scmp.eq.s32.totalorder %s15, 1
    %p101 = por %p99, %p100
    %p102 = scmp.ne.s32.totalorder %s91, %s92
    %p103 = scmp.eq.s32.totalorder %s15, 0
    %p104 = por %p102, %p103
    %p105 = scmp.ne.s32.totalorder %s91, %s92
    %p106 = scmp.eq.s32.totalorder %s16, 1
    %p107 = por %p105, %p106
    %p109 = scmp.ne.s32.totalorder %s92, %s108
    %p110 = scmp.eq.s32.totalorder %s16, 0
    %p111 = por %p109, %p110
    %p112 = scmp.le.s32.totalorder 1, %s10
    %p113 = scmp.lt.s32.totalorder %s10, 3
    %p114 = pnand %p112, %p113
    %p115 = pneg %p114
    // Predicated region
    $region9: #{nn_original_gravity_forward.1} parent=5 // pred_check
      _
    $region10: #{nn_original_gravity_forward.1} parent=5 // pred_check_branch
      %117 = sbr.rel (%p114) target = $region12
    $region11: #{nn_original_gravity_forward.1} parent=5 // pred_region
      %s118 = ssub.s32 %s10, 1
      // Predicated region
      $region13: #{nn_original_gravity_forward.1} parent=11 // pred_check
        %p119 = pneg %p57
      $region14: #{nn_original_gravity_forward.1} parent=11 // pred_check_branch
        %121 = sbr.rel (%p119) target = $region16
      $region15: #{nn_original_gravity_forward.1} parent=11 // pred_region
        _
      $region16: #{nn_original_gravity_forward.1} parent=11 // pred_fallthru
        _
      // Predicated region
      $region17: #{nn_original_gravity_forward.1} parent=11 // pred_check
        %p122 = pneg %p78
      $region18: #{nn_original_gravity_forward.1} parent=11 // pred_check_branch
        %124 = sbr.rel (%p122) target = $region20
      $region19: #{nn_original_gravity_forward.1} parent=11 // pred_region
        _
      $region20: #{nn_original_gravity_forward.1} parent=11 // pred_fallthru
        _
    $region12: #{nn_original_gravity_forward.1} parent=5 // pred_fallthru
      _
    %p125 = scmp.lt.s32.totalorder %s10, 2
    // Predicated region
    $region21: #{nn_original_gravity_forward.1} parent=5 // pred_check
      %p126 = pneg %p125
    $region22: #{nn_original_gravity_forward.1} parent=5 // pred_check_branch
      %128 = sbr.rel (%p126) target = $region24
    $region23: #{nn_original_gravity_forward.1} parent=5 // pred_region
      // Predicated region
      $region25: #{nn_original_gravity_forward.1} parent=23 // pred_check
        %p129 = pneg %p30
      $region26: #{nn_original_gravity_forward.1} parent=23 // pred_check_branch
        %131 = sbr.rel (%p129) target = $region28
      $region27: #{nn_original_gravity_forward.1} parent=23 // pred_region
        %p132 = scmp.lt.s32.totalorder %s10, 1
        %s133 = scalar_select %p132, %s10, 1
        %s134 = smul.addr %s133, 2
        %s135 = smul.addr %s134, 8
        %s136 = scalar_lea.vmem %s0, %s135
      $region28: #{nn_original_gravity_forward.1} parent=23 // pred_fallthru
        _
    $region24: #{nn_original_gravity_forward.1} parent=5 // pred_fallthru
      _
    %p137 = scmp.le.s32.totalorder 1, %s10
    %p138 = scmp.lt.s32.totalorder %s10, 3
    %p139 = pnand %p137, %p138
    %p140 = pneg %p139
    // Predicated region
    $region29: #{nn_original_gravity_forward.1} parent=5 // pred_check
      _
    $region30: #{nn_original_gravity_forward.1} parent=5 // pred_check_branch
      %142 = sbr.rel (%p139) target = $region32
    $region31: #{nn_original_gravity_forward.1} parent=5 // pred_region
      %s143 = ssub.s32 %s10, 1
      %p144 = scmp.lt.s32.totalorder %s15, 1
      %s145 = scalar_select %p144, %s15, 1
      %s146 = smul.addr %s145, 2
      %s147 = smul.addr %s146, 8
      %s148 = scalar_lea.vmem %s0, %s147
      %p149 = pneg %p36
      %p150 = pneg %p33
      %p151 = pneg %p57
      %p152 = pneg %p54
      %p153 = pneg %p78
      %p154 = pneg %p75
      %p155 = pneg %p104
      %p156 = pneg %p101
      %p157 = scmp.lt.s32.totalorder %s15, 1
      %s158 = scalar_select %p157, %s15, 1
      %s159 = smul.addr %s158, 8
      %s160 = scalar_lea.vmem %s3, %s159
      %p161 = scmp.lt.s32.totalorder %s15, 1
      %s162 = scalar_select %p161, %s15, 1
      %s163 = smul.addr %s162, 2
      %s164 = smul.addr %s163, 8
      %s165 = scalar_lea.vmem %s0, %s164
      %p166 = scmp.lt.s32.totalorder %s15, 1
      %s167 = scalar_select %p166, %s15, 1
      %s168 = smul.addr %s167, 8
      %s169 = scalar_lea.vmem %s3, %s168
      %s170 = sld [smem:[#allocation2]]
      %v171 = vld [vmem:[%s165] sm:$0xff]
      %v172 = vld [vmem:[%s165 + $0x8] sm:$0xff]
      %v173 = vld [vmem:[%s1] sm:$0xff]
      %v174 = vld [vmem:[%s1 + $0x8] sm:$0xff]
      %v175 = vld [vmem:[%s1 + $0x10] sm:$0xff]
      %v176 = vld [vmem:[%s1 + $0x18] sm:$0xff]
      %v177 = vld [vmem:[%s1 + $0x20] sm:$0xff]
      %v178 = vld [vmem:[%s1 + $0x28] sm:$0xff]
      %v179 = vld [vmem:[%s1 + $0x30] sm:$0xff]
      %v180 = vld [vmem:[%s1 + $0x38] sm:$0xff]
      %v181 = vld [vmem:[%s1 + $0x40] sm:$0xff]
      %v182 = vld [vmem:[%s1 + $0x48] sm:$0xff]
      %v183 = vld [vmem:[%s1 + $0x50] sm:$0xff]
      %v184 = vld [vmem:[%s1 + $0x58] sm:$0xff]
      %v185 = vld [vmem:[%s1 + $0x60] sm:$0xff]
      %v186 = vld [vmem:[%s1 + $0x68] sm:$0xff]
      %v187 = vld [vmem:[%s1 + $0x70] sm:$0xff]
      %v188 = vld [vmem:[%s1 + $0x78] sm:$0xff]
      %v189 = vld [vmem:[%s1 + $0x80] sm:$0xff]
      %v190 = vld [vmem:[%s1 + $0x88] sm:$0xff]
      %v191 = vld [vmem:[%s1 + $0x90] sm:$0xff]
      %v192 = vld [vmem:[%s1 + $0x98] sm:$0xff]
      %v193 = vld [vmem:[%s1 + $0xa0] sm:$0xff]
      %v194 = vld [vmem:[%s1 + $0xa8] sm:$0xff]
      %v195 = vld [vmem:[%s1 + $0xb0] sm:$0xff]
      %v196 = vld [vmem:[%s1 + $0xb8] sm:$0xff]
      %v197 = vld [vmem:[%s1 + $0xc0] sm:$0xff]
      %v198 = vld [vmem:[%s1 + $0xc8] sm:$0xff]
      %v199 = vld [vmem:[%s1 + $0xd0] sm:$0xff]
      %v200 = vld [vmem:[%s1 + $0xd8] sm:$0xff]
      %v201 = vld [vmem:[%s1 + $0xe0] sm:$0xff]
      %v202 = vld [vmem:[%s1 + $0xe8] sm:$0xff]
      %v203 = vld [vmem:[%s1 + $0xf0] sm:$0xff]
      %v204 = vld [vmem:[%s1 + $0xf8] sm:$0xff]
      %v205 = vstv %s170
      %206 = vmatprep.subr.mxu0 0.0
      %v207 = vand.u32 %v188, 4294901760
      %208 = vmatpush1.msra.mxu0 %v207
      %209 = vmatprep.subr.mxu0 0.0
      %v210 = vand.u32 %v187, 4294901760
      %211 = vmatpush1.msra.mxu0 %v210
      %212 = vmatprep.subr.mxu0 0.0
      %v213 = vand.u32 %v186, 4294901760
      %214 = vmatpush1.msra.mxu0 %v213
      %215 = vmatprep.subr.mxu0 0.0
      %v216 = vand.u32 %v185, 4294901760
      %217 = vmatpush1.msra.mxu0 %v216
      %218 = vmatprep.subr.mxu0 0.0
      %v219 = vand.u32 %v184, 4294901760
      %220 = vmatpush1.msra.mxu0 %v219
      %221 = vmatprep.subr.mxu0 0.0
      %v222 = vand.u32 %v183, 4294901760
      %223 = vmatpush1.msra.mxu0 %v222
      %224 = vmatprep.subr.mxu0 0.0
      %v225 = vand.u32 %v182, 4294901760
      %226 = vmatpush1.msra.mxu0 %v225
      %227 = vmatprep.subr.mxu0 0.0
      %v228 = vand.u32 %v181, 4294901760
      %229 = vmatpush1.msra.mxu0 %v228
      %230 = vmatprep.subr.mxu0 0.0
      %v231 = vand.u32 %v180, 4294901760
      %232 = vmatpush1.msra.mxu0 %v231
      %233 = vmatprep.subr.mxu0 0.0
      %v234 = vand.u32 %v179, 4294901760
      %235 = vmatpush1.msra.mxu0 %v234
      %236 = vmatprep.subr.mxu0 0.0
      %v237 = vand.u32 %v178, 4294901760
      %238 = vmatpush1.msra.mxu0 %v237
      %239 = vmatprep.subr.mxu0 0.0
      %v240 = vand.u32 %v177, 4294901760
      %241 = vmatpush1.msra.mxu0 %v240
      %242 = vmatprep.subr.mxu0 0.0
      %v243 = vand.u32 %v176, 4294901760
      %244 = vmatpush1.msra.mxu0 %v243
      %245 = vmatprep.subr.mxu0 0.0
      %v246 = vand.u32 %v175, 4294901760
      %247 = vmatpush1.msra.mxu0 %v246
      %248 = vmatprep.subr.mxu0 0.0
      %v249 = vand.u32 %v174, 4294901760
      %250 = vmatpush1.msra.mxu0 %v249
      %251 = vmatprep.subr.mxu0 0.0
      %v252 = vand.u32 %v173, 4294901760
      %253 = vmatpush1.msra.mxu0 %v252
      %254 = vmatprep.subr.mxu0 0.0
      %v255 = vand.u32 %v204, 4294901760
      %256 = vmatpush2.msra.mxu0 %v255
      %257 = vmatprep.subr.mxu0 0.0
      %v258 = vand.u32 %v203, 4294901760
      %259 = vmatpush2.msra.mxu0 %v258
      %260 = vmatprep.subr.mxu0 0.0
      %v261 = vand.u32 %v202, 4294901760
      %262 = vmatpush2.msra.mxu0 %v261
      %263 = vmatprep.subr.mxu0 0.0
      %v264 = vand.u32 %v201, 4294901760
      %265 = vmatpush2.msra.mxu0 %v264
      %266 = vmatprep.subr.mxu0 0.0
      %v267 = vand.u32 %v200, 4294901760
      %268 = vmatpush2.msra.mxu0 %v267
      %269 = vmatprep.subr.mxu0 0.0
      %v270 = vand.u32 %v199, 4294901760
      %271 = vmatpush2.msra.mxu0 %v270
      %272 = vmatprep.subr.mxu0 0.0
      %v273 = vand.u32 %v198, 4294901760
      %274 = vmatpush2.msra.mxu0 %v273
      %275 = vmatprep.subr.mxu0 0.0
      %v276 = vand.u32 %v197, 4294901760
      %277 = vmatpush2.msra.mxu0 %v276
      %278 = vmatprep.subr.mxu0 0.0
      %v279 = vand.u32 %v196, 4294901760
      %280 = vmatpush2.msra.mxu0 %v279
      %281 = vmatprep.subr.mxu0 0.0
      %v282 = vand.u32 %v195, 4294901760
      %283 = vmatpush2.msra.mxu0 %v282
      %284 = vmatprep.subr.mxu0 0.0
      %v285 = vand.u32 %v194, 4294901760
      %286 = vmatpush2.msra.mxu0 %v285
      %287 = vmatprep.subr.mxu0 0.0
      %v288 = vand.u32 %v193, 4294901760
      %289 = vmatpush2.msra.mxu0 %v288
      %290 = vmatprep.subr.mxu0 0.0
      %v291 = vand.u32 %v192, 4294901760
      %292 = vmatpush2.msra.mxu0 %v291
      %293 = vmatprep.subr.mxu0 0.0
      %v294 = vand.u32 %v191, 4294901760
      %295 = vmatpush2.msra.mxu0 %v294
      %296 = vmatprep.subr.mxu0 0.0
      %v297 = vand.u32 %v190, 4294901760
      %298 = vmatpush2.msra.mxu0 %v297
      %299 = vmatprep.subr.mxu0 0.0
      %v300 = vand.u32 %v189, 4294901760
      %301 = vmatpush2.msra.mxu0 %v300
      %v302 = vand.u32 %v172, 4294901760
      %v303 = vsub.f32 %v172, %v302
      %v304 = vand.u32 %v303, 4294901760
      %v305 = vsub.f32 %v303, %v304
      %v306 = vand.u32 %v305, 4294901760
      %307 = vmatprep.mubr.f32.mxu0 %v306
      %v308 = vand.u32 %v171, 4294901760
      %v309 = vsub.f32 %v171, %v308
      %v310 = vand.u32 %v309, 4294901760
      %v311 = vsub.f32 %v309, %v310
      %v312 = vand.u32 %v311, 4294901760
      %313 = vmatmul.mubr.f32.gmra.mxu0 %v312
      %v314 = vpop.f32.mrf.mxu0
      %v315 = vadd.f32 %v205, %v314
      %v316 = vpop.f32.mrf.mxu0
      %317 = vdwg.mxu0
      %318 = vmatprep.subr.mxu0 0.0
      %v319 = vand.u32 %v188, 4294901760
      %v320 = vsub.f32 %v188, %v319
      %v321 = vand.u32 %v320, 4294901760
      %v322 = vsub.f32 %v320, %v321
      %v323 = vand.u32 %v322, 4294901760
      %324 = vmatpush1.msra.mxu0 %v323
      %325 = vmatprep.subr.mxu0 0.0
      %v326 = vand.u32 %v187, 4294901760
      %v327 = vsub.f32 %v187, %v326
      %v328 = vand.u32 %v327, 4294901760
      %v329 = vsub.f32 %v327, %v328
      %v330 = vand.u32 %v329, 4294901760
      %331 = vmatpush1.msra.mxu0 %v330
      %332 = vmatprep.subr.mxu0 0.0
      %v333 = vand.u32 %v186, 4294901760
      %v334 = vsub.f32 %v186, %v333
      %v335 = vand.u32 %v334, 4294901760
      %v336 = vsub.f32 %v334, %v335
      %v337 = vand.u32 %v336, 4294901760
      %338 = vmatpush1.msra.mxu0 %v337
      %339 = vmatprep.subr.mxu0 0.0
      %v340 = vand.u32 %v185, 4294901760
      %v341 = vsub.f32 %v185, %v340
      %v342 = vand.u32 %v341, 4294901760
      %v343 = vsub.f32 %v341, %v342
      %v344 = vand.u32 %v343, 4294901760
      %345 = vmatpush1.msra.mxu0 %v344
      %346 = vmatprep.subr.mxu0 0.0
      %v347 = vand.u32 %v184, 4294901760
      %v348 = vsub.f32 %v184, %v347
      %v349 = vand.u32 %v348, 4294901760
      %v350 = vsub.f32 %v348, %v349
      %v351 = vand.u32 %v350, 4294901760
      %352 = vmatpush1.msra.mxu0 %v351
      %353 = vmatprep.subr.mxu0 0.0
      %v354 = vand.u32 %v183, 4294901760
      %v355 = vsub.f32 %v183, %v354
      %v356 = vand.u32 %v355, 4294901760
      %v357 = vsub.f32 %v355, %v356
      %v358 = vand.u32 %v357, 4294901760
      %359 = vmatpush1.msra.mxu0 %v358
      %360 = vmatprep.subr.mxu0 0.0
      %v361 = vand.u32 %v182, 4294901760
      %v362 = vsub.f32 %v182, %v361
      %v363 = vand.u32 %v362, 4294901760
      %v364 = vsub.f32 %v362, %v363
      %v365 = vand.u32 %v364, 4294901760
      %366 = vmatpush1.msra.mxu0 %v365
      %367 = vmatprep.subr.mxu0 0.0
      %v368 = vand.u32 %v181, 4294901760
      %v369 = vsub.f32 %v181, %v368
      %v370 = vand.u32 %v369, 4294901760
      %v371 = vsub.f32 %v369, %v370
      %v372 = vand.u32 %v371, 4294901760
      %373 = vmatpush1.msra.mxu0 %v372
      %374 = vmatprep.subr.mxu0 0.0
      %v375 = vand.u32 %v180, 4294901760
      %v376 = vsub.f32 %v180, %v375
      %v377 = vand.u32 %v376, 4294901760
      %v378 = vsub.f32 %v376, %v377
      %v379 = vand.u32 %v378, 4294901760
      %380 = vmatpush1.msra.mxu0 %v379
      %381 = vmatprep.subr.mxu0 0.0
      %v382 = vand.u32 %v179, 4294901760
      %v383 = vsub.f32 %v179, %v382
      %v384 = vand.u32 %v383, 4294901760
      %v385 = vsub.f32 %v383, %v384
      %v386 = vand.u32 %v385, 4294901760
      %387 = vmatpush1.msra.mxu0 %v386
      %388 = vmatprep.subr.mxu0 0.0
      %v389 = vand.u32 %v178, 4294901760
      %v390 = vsub.f32 %v178, %v389
      %v391 = vand.u32 %v390, 4294901760
      %v392 = vsub.f32 %v390, %v391
      %v393 = vand.u32 %v392, 4294901760
      %394 = vmatpush1.msra.mxu0 %v393
      %395 = vmatprep.subr.mxu0 0.0
      %v396 = vand.u32 %v177, 4294901760
      %v397 = vsub.f32 %v177, %v396
      %v398 = vand.u32 %v397, 4294901760
      %v399 = vsub.f32 %v397, %v398
      %v400 = vand.u32 %v399, 4294901760
      %401 = vmatpush1.msra.mxu0 %v400
      %402 = vmatprep.subr.mxu0 0.0
      %v403 = vand.u32 %v176, 4294901760
      %v404 = vsub.f32 %v176, %v403
      %v405 = vand.u32 %v404, 4294901760
      %v406 = vsub.f32 %v404, %v405
      %v407 = vand.u32 %v406, 4294901760
      %408 = vmatpush1.msra.mxu0 %v407
      %409 = vmatprep.subr.mxu0 0.0
      %v410 = vand.u32 %v175, 4294901760
      %v411 = vsub.f32 %v175, %v410
      %v412 = vand.u32 %v411, 4294901760
      %v413 = vsub.f32 %v411, %v412
      %v414 = vand.u32 %v413, 4294901760
      %415 = vmatpush1.msra.mxu0 %v414
      %416 = vmatprep.subr.mxu0 0.0
      %v417 = vand.u32 %v174, 4294901760
      %v418 = vsub.f32 %v174, %v417
      %v419 = vand.u32 %v418, 4294901760
      %v420 = vsub.f32 %v418, %v419
      %v421 = vand.u32 %v420, 4294901760
      %422 = vmatpush1.msra.mxu0 %v421
      %423 = vmatprep.subr.mxu0 0.0
      %v424 = vand.u32 %v173, 4294901760
      %v425 = vsub.f32 %v173, %v424
      %v426 = vand.u32 %v425, 4294901760
      %v427 = vsub.f32 %v425, %v426
      %v428 = vand.u32 %v427, 4294901760
      %429 = vmatpush1.msra.mxu0 %v428
      %430 = vmatprep.subr.mxu0 0.0
      %v431 = vand.u32 %v204, 4294901760
      %v432 = vsub.f32 %v204, %v431
      %v433 = vand.u32 %v432, 4294901760
      %v434 = vsub.f32 %v432, %v433
      %v435 = vand.u32 %v434, 4294901760
      %436 = vmatpush2.msra.mxu0 %v435
      %437 = vmatprep.subr.mxu0 0.0
      %v438 = vand.u32 %v203, 4294901760
      %v439 = vsub.f32 %v203, %v438
      %v440 = vand.u32 %v439, 4294901760
      %v441 = vsub.f32 %v439, %v440
      %v442 = vand.u32 %v441, 4294901760
      %443 = vmatpush2.msra.mxu0 %v442
      %444 = vmatprep.subr.mxu0 0.0
      %v445 = vand.u32 %v202, 4294901760
      %v446 = vsub.f32 %v202, %v445
      %v447 = vand.u32 %v446, 4294901760
      %v448 = vsub.f32 %v446, %v447
      %v449 = vand.u32 %v448, 4294901760
      %450 = vmatpush2.msra.mxu0 %v449
      %451 = vmatprep.subr.mxu0 0.0
      %v452 = vand.u32 %v201, 4294901760
      %v453 = vsub.f32 %v201, %v452
      %v454 = vand.u32 %v453, 4294901760
      %v455 = vsub.f32 %v453, %v454
      %v456 = vand.u32 %v455, 4294901760
      %457 = vmatpush2.msra.mxu0 %v456
      %458 = vmatprep.subr.mxu0 0.0
      %v459 = vand.u32 %v200, 4294901760
      %v460 = vsub.f32 %v200, %v459
      %v461 = vand.u32 %v460, 4294901760
      %v462 = vsub.f32 %v460, %v461
      %v463 = vand.u32 %v462, 4294901760
      %464 = vmatpush2.msra.mxu0 %v463
      %465 = vmatprep.subr.mxu0 0.0
      %v466 = vand.u32 %v199, 4294901760
      %v467 = vsub.f32 %v199, %v466
      %v468 = vand.u32 %v467, 4294901760
      %v469 = vsub.f32 %v467, %v468
      %v470 = vand.u32 %v469, 4294901760
      %471 = vmatpush2.msra.mxu0 %v470
      %472 = vmatprep.subr.mxu0 0.0
      %v473 = vand.u32 %v198, 4294901760
      %v474 = vsub.f32 %v198, %v473
      %v475 = vand.u32 %v474, 4294901760
      %v476 = vsub.f32 %v474, %v475
      %v477 = vand.u32 %v476, 4294901760
      %478 = vmatpush2.msra.mxu0 %v477
      %479 = vmatprep.subr.mxu0 0.0
      %v480 = vand.u32 %v197, 4294901760
      %v481 = vsub.f32 %v197, %v480
      %v482 = vand.u32 %v481, 4294901760
      %v483 = vsub.f32 %v481, %v482
      %v484 = vand.u32 %v483, 4294901760
      %485 = vmatpush2.msra.mxu0 %v484
      %486 = vmatprep.subr.mxu0 0.0
      %v487 = vand.u32 %v196, 4294901760
      %v488 = vsub.f32 %v196, %v487
      %v489 = vand.u32 %v488, 4294901760
      %v490 = vsub.f32 %v488, %v489
      %v491 = vand.u32 %v490, 4294901760
      %492 = vmatpush2.msra.mxu0 %v491
      %493 = vmatprep.subr.mxu0 0.0
      %v494 = vand.u32 %v195, 4294901760
      %v495 = vsub.f32 %v195, %v494
      %v496 = vand.u32 %v495, 4294901760
      %v497 = vsub.f32 %v495, %v496
      %v498 = vand.u32 %v497, 4294901760
      %499 = vmatpush2.msra.mxu0 %v498
      %500 = vmatprep.subr.mxu0 0.0
      %v501 = vand.u32 %v194, 4294901760
      %v502 = vsub.f32 %v194, %v501
      %v503 = vand.u32 %v502, 4294901760
      %v504 = vsub.f32 %v502, %v503
      %v505 = vand.u32 %v504, 4294901760
      %506 = vmatpush2.msra.mxu0 %v505
      %507 = vmatprep.subr.mxu0 0.0
      %v508 = vand.u32 %v193, 4294901760
      %v509 = vsub.f32 %v193, %v508
      %v510 = vand.u32 %v509, 4294901760
      %v511 = vsub.f32 %v509, %v510
      %v512 = vand.u32 %v511, 4294901760
      %513 = vmatpush2.msra.mxu0 %v512
      %514 = vmatprep.subr.mxu0 0.0
      %v515 = vand.u32 %v192, 4294901760
      %v516 = vsub.f32 %v192, %v515
      %v517 = vand.u32 %v516, 4294901760
      %v518 = vsub.f32 %v516, %v517
      %v519 = vand.u32 %v518, 4294901760
      %520 = vmatpush2.msra.mxu0 %v519
      %521 = vmatprep.subr.mxu0 0.0
      %v522 = vand.u32 %v191, 4294901760
      %v523 = vsub.f32 %v191, %v522
      %v524 = vand.u32 %v523, 4294901760
      %v525 = vsub.f32 %v523, %v524
      %v526 = vand.u32 %v525, 4294901760
      %527 = vmatpush2.msra.mxu0 %v526
      %528 = vmatprep.subr.mxu0 0.0
      %v529 = vand.u32 %v190, 4294901760
      %v530 = vsub.f32 %v190, %v529
      %v531 = vand.u32 %v530, 4294901760
      %v532 = vsub.f32 %v530, %v531
      %v533 = vand.u32 %v532, 4294901760
      %534 = vmatpush2.msra.mxu0 %v533
      %535 = vmatprep.subr.mxu0 0.0
      %v536 = vand.u32 %v189, 4294901760
      %v537 = vsub.f32 %v189, %v536
      %v538 = vand.u32 %v537, 4294901760
      %v539 = vsub.f32 %v537, %v538
      %v540 = vand.u32 %v539, 4294901760
      %541 = vmatpush2.msra.mxu0 %v540
      %v542 = vand.u32 %v172, 4294901760
      %543 = vmatprep.mubr.f32.mxu0 %v542
      %v544 = vand.u32 %v171, 4294901760
      %545 = vmatmul.mubr.f32.gmra.mxu0 %v544
      %v546 = vpop.f32.mrf.mxu0
      %v547 = vadd.f32 %v315, %v546
      %v548 = vpop.f32.mrf.mxu0
      %549 = vdwg.mxu0
      %550 = vmatprep.subr.mxu0 0.0
      %v551 = vand.u32 %v188, 4294901760
      %v552 = vsub.f32 %v188, %v551
      %553 = vmatpush1.msra.mxu0 %v552
      %554 = vmatprep.subr.mxu0 0.0
      %v555 = vand.u32 %v187, 4294901760
      %v556 = vsub.f32 %v187, %v555
      %557 = vmatpush1.msra.mxu0 %v556
      %558 = vmatprep.subr.mxu0 0.0
      %v559 = vand.u32 %v186, 4294901760
      %v560 = vsub.f32 %v186, %v559
      %561 = vmatpush1.msra.mxu0 %v560
      %562 = vmatprep.subr.mxu0 0.0
      %v563 = vand.u32 %v185, 4294901760
      %v564 = vsub.f32 %v185, %v563
      %565 = vmatpush1.msra.mxu0 %v564
      %566 = vmatprep.subr.mxu0 0.0
      %v567 = vand.u32 %v184, 4294901760
      %v568 = vsub.f32 %v184, %v567
      %569 = vmatpush1.msra.mxu0 %v568
      %570 = vmatprep.subr.mxu0 0.0
      %v571 = vand.u32 %v183, 4294901760
      %v572 = vsub.f32 %v183, %v571
      %573 = vmatpush1.msra.mxu0 %v572
      %574 = vmatprep.subr.mxu0 0.0
      %v575 = vand.u32 %v182, 4294901760
      %v576 = vsub.f32 %v182, %v575
      %577 = vmatpush1.msra.mxu0 %v576
      %578 = vmatprep.subr.mxu0 0.0
      %v579 = vand.u32 %v181, 4294901760
      %v580 = vsub.f32 %v181, %v579
      %581 = vmatpush1.msra.mxu0 %v580
      %582 = vmatprep.subr.mxu0 0.0
      %v583 = vand.u32 %v180, 4294901760
      %v584 = vsub.f32 %v180, %v583
      %585 = vmatpush1.msra.mxu0 %v584
      %586 = vmatprep.subr.mxu0 0.0
      %v587 = vand.u32 %v179, 4294901760
      %v588 = vsub.f32 %v179, %v587
      %589 = vmatpush1.msra.mxu0 %v588
      %590 = vmatprep.subr.mxu0 0.0
      %v591 = vand.u32 %v178, 4294901760
      %v592 = vsub.f32 %v178, %v591
      %593 = vmatpush1.msra.mxu0 %v592
      %594 = vmatprep.subr.mxu0 0.0
      %v595 = vand.u32 %v177, 4294901760
      %v596 = vsub.f32 %v177, %v595
      %597 = vmatpush1.msra.mxu0 %v596
      %598 = vmatprep.subr.mxu0 0.0
      %v599 = vand.u32 %v176, 4294901760
      %v600 = vsub.f32 %v176, %v599
      %601 = vmatpush1.msra.mxu0 %v600
      %602 = vmatprep.subr.mxu0 0.0
      %v603 = vand.u32 %v175, 4294901760
      %v604 = vsub.f32 %v175, %v603
      %605 = vmatpush1.msra.mxu0 %v604
      %606 = vmatprep.subr.mxu0 0.0
      %v607 = vand.u32 %v174, 4294901760
      %v608 = vsub.f32 %v174, %v607
      %609 = vmatpush1.msra.mxu0 %v608
      %610 = vmatprep.subr.mxu0 0.0
      %v611 = vand.u32 %v173, 4294901760
      %v612 = vsub.f32 %v173, %v611
      %613 = vmatpush1.msra.mxu0 %v612
      %614 = vmatprep.subr.mxu0 0.0
      %v615 = vand.u32 %v204, 4294901760
      %v616 = vsub.f32 %v204, %v615
      %617 = vmatpush2.msra.mxu0 %v616
      %618 = vmatprep.subr.mxu0 0.0
      %v619 = vand.u32 %v203, 4294901760
      %v620 = vsub.f32 %v203, %v619
      %621 = vmatpush2.msra.mxu0 %v620
      %622 = vmatprep.subr.mxu0 0.0
      %v623 = vand.u32 %v202, 4294901760
      %v624 = vsub.f32 %v202, %v623
      %625 = vmatpush2.msra.mxu0 %v624
      %626 = vmatprep.subr.mxu0 0.0
      %v627 = vand.u32 %v201, 4294901760
      %v628 = vsub.f32 %v201, %v627
      %629 = vmatpush2.msra.mxu0 %v628
      %630 = vmatprep.subr.mxu0 0.0
      %v631 = vand.u32 %v200, 4294901760
      %v632 = vsub.f32 %v200, %v631
      %633 = vmatpush2.msra.mxu0 %v632
      %634 = vmatprep.subr.mxu0 0.0
      %v635 = vand.u32 %v199, 4294901760
      %v636 = vsub.f32 %v199, %v635
      %637 = vmatpush2.msra.mxu0 %v636
      %638 = vmatprep.subr.mxu0 0.0
      %v639 = vand.u32 %v198, 4294901760
      %v640 = vsub.f32 %v198, %v639
      %641 = vmatpush2.msra.mxu0 %v640
      %642 = vmatprep.subr.mxu0 0.0
      %v643 = vand.u32 %v197, 4294901760
      %v644 = vsub.f32 %v197, %v643
      %645 = vmatpush2.msra.mxu0 %v644
      %646 = vmatprep.subr.mxu0 0.0
      %v647 = vand.u32 %v196, 4294901760
      %v648 = vsub.f32 %v196, %v647
      %649 = vmatpush2.msra.mxu0 %v648
      %650 = vmatprep.subr.mxu0 0.0
      %v651 = vand.u32 %v195, 4294901760
      %v652 = vsub.f32 %v195, %v651
      %653 = vmatpush2.msra.mxu0 %v652
      %654 = vmatprep.subr.mxu0 0.0
      %v655 = vand.u32 %v194, 4294901760
      %v656 = vsub.f32 %v194, %v655
      %657 = vmatpush2.msra.mxu0 %v656
      %658 = vmatprep.subr.mxu0 0.0
      %v659 = vand.u32 %v193, 4294901760
      %v660 = vsub.f32 %v193, %v659
      %661 = vmatpush2.msra.mxu0 %v660
      %662 = vmatprep.subr.mxu0 0.0
      %v663 = vand.u32 %v192, 4294901760
      %v664 = vsub.f32 %v192, %v663
      %665 = vmatpush2.msra.mxu0 %v664
      %666 = vmatprep.subr.mxu0 0.0
      %v667 = vand.u32 %v191, 4294901760
      %v668 = vsub.f32 %v191, %v667
      %669 = vmatpush2.msra.mxu0 %v668
      %670 = vmatprep.subr.mxu0 0.0
      %v671 = vand.u32 %v190, 4294901760
      %v672 = vsub.f32 %v190, %v671
      %673 = vmatpush2.msra.mxu0 %v672
      %674 = vmatprep.subr.mxu0 0.0
      %v675 = vand.u32 %v189, 4294901760
      %v676 = vsub.f32 %v189, %v675
      %677 = vmatpush2.msra.mxu0 %v676
      %v678 = vand.u32 %v172, 4294901760
      %v679 = vsub.f32 %v172, %v678
      %680 = vmatprep.mubr.f32.mxu0 %v679
      %v681 = vand.u32 %v171, 4294901760
      %v682 = vsub.f32 %v171, %v681
      %683 = vmatmul.mubr.f32.gmra.mxu0 %v682
      %v684 = vpop.f32.mrf.mxu0
      %v685 = vadd.f32 %v547, %v684
      %v686 = vpop.f32.mrf.mxu0
      %687 = vdwg.mxu0
      %688 = vmatprep.subr.mxu0 0.0
      %v689 = vand.u32 %v188, 4294901760
      %690 = vmatpush1.msra.mxu0 %v689
      %691 = vmatprep.subr.mxu0 0.0
      %v692 = vand.u32 %v187, 4294901760
      %693 = vmatpush1.msra.mxu0 %v692
      %694 = vmatprep.subr.mxu0 0.0
      %v695 = vand.u32 %v186, 4294901760
      %696 = vmatpush1.msra.mxu0 %v695
      %697 = vmatprep.subr.mxu0 0.0
      %v698 = vand.u32 %v185, 4294901760
      %699 = vmatpush1.msra.mxu0 %v698
      %700 = vmatprep.subr.mxu0 0.0
      %v701 = vand.u32 %v184, 4294901760
      %702 = vmatpush1.msra.mxu0 %v701
      %703 = vmatprep.subr.mxu0 0.0
      %v704 = vand.u32 %v183, 4294901760
      %705 = vmatpush1.msra.mxu0 %v704
      %706 = vmatprep.subr.mxu0 0.0
      %v707 = vand.u32 %v182, 4294901760
      %708 = vmatpush1.msra.mxu0 %v707
      %709 = vmatprep.subr.mxu0 0.0
      %v710 = vand.u32 %v181, 4294901760
      %711 = vmatpush1.msra.mxu0 %v710
      %712 = vmatprep.subr.mxu0 0.0
      %v713 = vand.u32 %v180, 4294901760
      %714 = vmatpush1.msra.mxu0 %v713
      %715 = vmatprep.subr.mxu0 0.0
      %v716 = vand.u32 %v179, 4294901760
      %717 = vmatpush1.msra.mxu0 %v716
      %718 = vmatprep.subr.mxu0 0.0
      %v719 = vand.u32 %v178, 4294901760
      %720 = vmatpush1.msra.mxu0 %v719
      %721 = vmatprep.subr.mxu0 0.0
      %v722 = vand.u32 %v177, 4294901760
      %723 = vmatpush1.msra.mxu0 %v722
      %724 = vmatprep.subr.mxu0 0.0
      %v725 = vand.u32 %v176, 4294901760
      %726 = vmatpush1.msra.mxu0 %v725
      %727 = vmatprep.subr.mxu0 0.0
      %v728 = vand.u32 %v175, 4294901760
      %729 = vmatpush1.msra.mxu0 %v728
      %730 = vmatprep.subr.mxu0 0.0
      %v731 = vand.u32 %v174, 4294901760
      %732 = vmatpush1.msra.mxu0 %v731
      %733 = vmatprep.subr.mxu0 0.0
      %v734 = vand.u32 %v173, 4294901760
      %735 = vmatpush1.msra.mxu0 %v734
      %736 = vmatprep.subr.mxu0 0.0
      %v737 = vand.u32 %v204, 4294901760
      %738 = vmatpush2.msra.mxu0 %v737
      %739 = vmatprep.subr.mxu0 0.0
      %v740 = vand.u32 %v203, 4294901760
      %741 = vmatpush2.msra.mxu0 %v740
      %742 = vmatprep.subr.mxu0 0.0
      %v743 = vand.u32 %v202, 4294901760
      %744 = vmatpush2.msra.mxu0 %v743
      %745 = vmatprep.subr.mxu0 0.0
      %v746 = vand.u32 %v201, 4294901760
      %747 = vmatpush2.msra.mxu0 %v746
      %748 = vmatprep.subr.mxu0 0.0
      %v749 = vand.u32 %v200, 4294901760
      %750 = vmatpush2.msra.mxu0 %v749
      %751 = vmatprep.subr.mxu0 0.0
      %v752 = vand.u32 %v199, 4294901760
      %753 = vmatpush2.msra.mxu0 %v752
      %754 = vmatprep.subr.mxu0 0.0
      %v755 = vand.u32 %v198, 4294901760
      %756 = vmatpush2.msra.mxu0 %v755
      %757 = vmatprep.subr.mxu0 0.0
      %v758 = vand.u32 %v197, 4294901760
      %759 = vmatpush2.msra.mxu0 %v758
      %760 = vmatprep.subr.mxu0 0.0
      %v761 = vand.u32 %v196, 4294901760
      %762 = vmatpush2.msra.mxu0 %v761
      %763 = vmatprep.subr.mxu0 0.0
      %v764 = vand.u32 %v195, 4294901760
      %765 = vmatpush2.msra.mxu0 %v764
      %766 = vmatprep.subr.mxu0 0.0
      %v767 = vand.u32 %v194, 4294901760
      %768 = vmatpush2.msra.mxu0 %v767
      %769 = vmatprep.subr.mxu0 0.0
      %v770 = vand.u32 %v193, 4294901760
      %771 = vmatpush2.msra.mxu0 %v770
      %772 = vmatprep.subr.mxu0 0.0
      %v773 = vand.u32 %v192, 4294901760
      %774 = vmatpush2.msra.mxu0 %v773
      %775 = vmatprep.subr.mxu0 0.0
      %v776 = vand.u32 %v191, 4294901760
      %777 = vmatpush2.msra.mxu0 %v776
      %778 = vmatprep.subr.mxu0 0.0
      %v779 = vand.u32 %v190, 4294901760
      %780 = vmatpush2.msra.mxu0 %v779
      %781 = vmatprep.subr.mxu0 0.0
      %v782 = vand.u32 %v189, 4294901760
      %783 = vmatpush2.msra.mxu0 %v782
      %v784 = vand.u32 %v172, 4294901760
      %v785 = vsub.f32 %v172, %v784
      %v786 = vand.u32 %v785, 4294901760
      %787 = vmatprep.mubr.f32.mxu0 %v786
      %v788 = vand.u32 %v171, 4294901760
      %v789 = vsub.f32 %v171, %v788
      %v790 = vand.u32 %v789, 4294901760
      %791 = vmatmul.mubr.f32.gmra.mxu0 %v790
      %v792 = vpop.f32.mrf.mxu0
      %v793 = vadd.f32 %v685, %v792
      %v794 = vpop.f32.mrf.mxu0
      %795 = vdwg.mxu0
      %796 = vmatprep.subr.mxu0 0.0
      %v797 = vand.u32 %v188, 4294901760
      %v798 = vsub.f32 %v188, %v797
      %v799 = vand.u32 %v798, 4294901760
      %800 = vmatpush1.msra.mxu0 %v799
      %801 = vmatprep.subr.mxu0 0.0
      %v802 = vand.u32 %v187, 4294901760
      %v803 = vsub.f32 %v187, %v802
      %v804 = vand.u32 %v803, 4294901760
      %805 = vmatpush1.msra.mxu0 %v804
      %806 = vmatprep.subr.mxu0 0.0
      %v807 = vand.u32 %v186, 4294901760
      %v808 = vsub.f32 %v186, %v807
      %v809 = vand.u32 %v808, 4294901760
      %810 = vmatpush1.msra.mxu0 %v809
      %811 = vmatprep.subr.mxu0 0.0
      %v812 = vand.u32 %v185, 4294901760
      %v813 = vsub.f32 %v185, %v812
      %v814 = vand.u32 %v813, 4294901760
      %815 = vmatpush1.msra.mxu0 %v814
      %816 = vmatprep.subr.mxu0 0.0
      %v817 = vand.u32 %v184, 4294901760
      %v818 = vsub.f32 %v184, %v817
      %v819 = vand.u32 %v818, 4294901760
      %820 = vmatpush1.msra.mxu0 %v819
      %821 = vmatprep.subr.mxu0 0.0
      %v822 = vand.u32 %v183, 4294901760
      %v823 = vsub.f32 %v183, %v822
      %v824 = vand.u32 %v823, 4294901760
      %825 = vmatpush1.msra.mxu0 %v824
      %826 = vmatprep.subr.mxu0 0.0
      %v827 = vand.u32 %v182, 4294901760
      %v828 = vsub.f32 %v182, %v827
      %v829 = vand.u32 %v828, 4294901760
      %830 = vmatpush1.msra.mxu0 %v829
      %831 = vmatprep.subr.mxu0 0.0
      %v832 = vand.u32 %v181, 4294901760
      %v833 = vsub.f32 %v181, %v832
      %v834 = vand.u32 %v833, 4294901760
      %835 = vmatpush1.msra.mxu0 %v834
      %836 = vmatprep.subr.mxu0 0.0
      %v837 = vand.u32 %v180, 4294901760
      %v838 = vsub.f32 %v180, %v837
      %v839 = vand.u32 %v838, 4294901760
      %840 = vmatpush1.msra.mxu0 %v839
      %841 = vmatprep.subr.mxu0 0.0
      %v842 = vand.u32 %v179, 4294901760
      %v843 = vsub.f32 %v179, %v842
      %v844 = vand.u32 %v843, 4294901760
      %845 = vmatpush1.msra.mxu0 %v844
      %846 = vmatprep.subr.mxu0 0.0
      %v847 = vand.u32 %v178, 4294901760
      %v848 = vsub.f32 %v178, %v847
      %v849 = vand.u32 %v848, 4294901760
      %850 = vmatpush1.msra.mxu0 %v849
      %851 = vmatprep.subr.mxu0 0.0
      %v852 = vand.u32 %v177, 4294901760
      %v853 = vsub.f32 %v177, %v852
      %v854 = vand.u32 %v853, 4294901760
      %855 = vmatpush1.msra.mxu0 %v854
      %856 = vmatprep.subr.mxu0 0.0
      %v857 = vand.u32 %v176, 4294901760
      %v858 = vsub.f32 %v176, %v857
      %v859 = vand.u32 %v858, 4294901760
      %860 = vmatpush1.msra.mxu0 %v859
      %861 = vmatprep.subr.mxu0 0.0
      %v862 = vand.u32 %v175, 4294901760
      %v863 = vsub.f32 %v175, %v862
      %v864 = vand.u32 %v863, 4294901760
      %865 = vmatpush1.msra.mxu0 %v864
      %866 = vmatprep.subr.mxu0 0.0
      %v867 = vand.u32 %v174, 4294901760
      %v868 = vsub.f32 %v174, %v867
      %v869 = vand.u32 %v868, 4294901760
      %870 = vmatpush1.msra.mxu0 %v869
      %871 = vmatprep.subr.mxu0 0.0
      %v872 = vand.u32 %v173, 4294901760
      %v873 = vsub.f32 %v173, %v872
      %v874 = vand.u32 %v873, 4294901760
      %875 = vmatpush1.msra.mxu0 %v874
      %876 = vmatprep.subr.mxu0 0.0
      %v877 = vand.u32 %v204, 4294901760
      %v878 = vsub.f32 %v204, %v877
      %v879 = vand.u32 %v878, 4294901760
      %880 = vmatpush2.msra.mxu0 %v879
      %881 = vmatprep.subr.mxu0 0.0
      %v882 = vand.u32 %v203, 4294901760
      %v883 = vsub.f32 %v203, %v882
      %v884 = vand.u32 %v883, 4294901760
      %885 = vmatpush2.msra.mxu0 %v884
      %886 = vmatprep.subr.mxu0 0.0
      %v887 = vand.u32 %v202, 4294901760
      %v888 = vsub.f32 %v202, %v887
      %v889 = vand.u32 %v888, 4294901760
      %890 = vmatpush2.msra.mxu0 %v889
      %891 = vmatprep.subr.mxu0 0.0
      %v892 = vand.u32 %v201, 4294901760
      %v893 = vsub.f32 %v201, %v892
      %v894 = vand.u32 %v893, 4294901760
      %895 = vmatpush2.msra.mxu0 %v894
      %896 = vmatprep.subr.mxu0 0.0
      %v897 = vand.u32 %v200, 4294901760
      %v898 = vsub.f32 %v200, %v897
      %v899 = vand.u32 %v898, 4294901760
      %900 = vmatpush2.msra.mxu0 %v899
      %901 = vmatprep.subr.mxu0 0.0
      %v902 = vand.u32 %v199, 4294901760
      %v903 = vsub.f32 %v199, %v902
      %v904 = vand.u32 %v903, 4294901760
      %905 = vmatpush2.msra.mxu0 %v904
      %906 = vmatprep.subr.mxu0 0.0
      %v907 = vand.u32 %v198, 4294901760
      %v908 = vsub.f32 %v198, %v907
      %v909 = vand.u32 %v908, 4294901760
      %910 = vmatpush2.msra.mxu0 %v909
      %911 = vmatprep.subr.mxu0 0.0
      %v912 = vand.u32 %v197, 4294901760
      %v913 = vsub.f32 %v197, %v912
      %v914 = vand.u32 %v913, 4294901760
      %915 = vmatpush2.msra.mxu0 %v914
      %916 = vmatprep.subr.mxu0 0.0
      %v917 = vand.u32 %v196, 4294901760
      %v918 = vsub.f32 %v196, %v917
      %v919 = vand.u32 %v918, 4294901760
      %920 = vmatpush2.msra.mxu0 %v919
      %921 = vmatprep.subr.mxu0 0.0
      %v922 = vand.u32 %v195, 4294901760
      %v923 = vsub.f32 %v195, %v922
      %v924 = vand.u32 %v923, 4294901760
      %925 = vmatpush2.msra.mxu0 %v924
      %926 = vmatprep.subr.mxu0 0.0
      %v927 = vand.u32 %v194, 4294901760
      %v928 = vsub.f32 %v194, %v927
      %v929 = vand.u32 %v928, 4294901760
      %930 = vmatpush2.msra.mxu0 %v929
      %931 = vmatprep.subr.mxu0 0.0
      %v932 = vand.u32 %v193, 4294901760
      %v933 = vsub.f32 %v193, %v932
      %v934 = vand.u32 %v933, 4294901760
      %935 = vmatpush2.msra.mxu0 %v934
      %936 = vmatprep.subr.mxu0 0.0
      %v937 = vand.u32 %v192, 4294901760
      %v938 = vsub.f32 %v192, %v937
      %v939 = vand.u32 %v938, 4294901760
      %940 = vmatpush2.msra.mxu0 %v939
      %941 = vmatprep.subr.mxu0 0.0
      %v942 = vand.u32 %v191, 4294901760
      %v943 = vsub.f32 %v191, %v942
      %v944 = vand.u32 %v943, 4294901760
      %945 = vmatpush2.msra.mxu0 %v944
      %946 = vmatprep.subr.mxu0 0.0
      %v947 = vand.u32 %v190, 4294901760
      %v948 = vsub.f32 %v190, %v947
      %v949 = vand.u32 %v948, 4294901760
      %950 = vmatpush2.msra.mxu0 %v949
      %951 = vmatprep.subr.mxu0 0.0
      %v952 = vand.u32 %v189, 4294901760
      %v953 = vsub.f32 %v189, %v952
      %v954 = vand.u32 %v953, 4294901760
      %955 = vmatpush2.msra.mxu0 %v954
      %v956 = vand.u32 %v172, 4294901760
      %957 = vmatprep.mubr.f32.mxu0 %v956
      %v958 = vand.u32 %v171, 4294901760
      %959 = vmatmul.mubr.f32.gmra.mxu0 %v958
      %v960 = vpop.f32.mrf.mxu0
      %v961 = vadd.f32 %v793, %v960
      %v962 = vpop.f32.mrf.mxu0
      %963 = vdwg.mxu0
      %964 = vmatprep.subr.mxu0 0.0
      %v965 = vand.u32 %v188, 4294901760
      %966 = vmatpush1.msra.mxu0 %v965
      %967 = vmatprep.subr.mxu0 0.0
      %v968 = vand.u32 %v187, 4294901760
      %969 = vmatpush1.msra.mxu0 %v968
      %970 = vmatprep.subr.mxu0 0.0
      %v971 = vand.u32 %v186, 4294901760
      %972 = vmatpush1.msra.mxu0 %v971
      %973 = vmatprep.subr.mxu0 0.0
      %v974 = vand.u32 %v185, 4294901760
      %975 = vmatpush1.msra.mxu0 %v974
      %976 = vmatprep.subr.mxu0 0.0
      %v977 = vand.u32 %v184, 4294901760
      %978 = vmatpush1.msra.mxu0 %v977
      %979 = vmatprep.subr.mxu0 0.0
      %v980 = vand.u32 %v183, 4294901760
      %981 = vmatpush1.msra.mxu0 %v980
      %982 = vmatprep.subr.mxu0 0.0
      %v983 = vand.u32 %v182, 4294901760
      %984 = vmatpush1.msra.mxu0 %v983
      %985 = vmatprep.subr.mxu0 0.0
      %v986 = vand.u32 %v181, 4294901760
      %987 = vmatpush1.msra.mxu0 %v986
      %988 = vmatprep.subr.mxu0 0.0
      %v989 = vand.u32 %v180, 4294901760
      %990 = vmatpush1.msra.mxu0 %v989
      %991 = vmatprep.subr.mxu0 0.0
      %v992 = vand.u32 %v179, 4294901760
      %993 = vmatpush1.msra.mxu0 %v992
      %994 = vmatprep.subr.mxu0 0.0
      %v995 = vand.u32 %v178, 4294901760
      %996 = vmatpush1.msra.mxu0 %v995
      %997 = vmatprep.subr.mxu0 0.0
      %v998 = vand.u32 %v177, 4294901760
      %999 = vmatpush1.msra.mxu0 %v998
      %1000 = vmatprep.subr.mxu0 0.0
      %v1001 = vand.u32 %v176, 4294901760
      %1002 = vmatpush1.msra.mxu0 %v1001
      %1003 = vmatprep.subr.mxu0 0.0
      %v1004 = vand.u32 %v175, 4294901760
      %1005 = vmatpush1.msra.mxu0 %v1004
      %1006 = vmatprep.subr.mxu0 0.0
      %v1007 = vand.u32 %v174, 4294901760
      %1008 = vmatpush1.msra.mxu0 %v1007
      %1009 = vmatprep.subr.mxu0 0.0
      %v1010 = vand.u32 %v173, 4294901760
      %1011 = vmatpush1.msra.mxu0 %v1010
      %1012 = vmatprep.subr.mxu0 0.0
      %v1013 = vand.u32 %v204, 4294901760
      %1014 = vmatpush2.msra.mxu0 %v1013
      %1015 = vmatprep.subr.mxu0 0.0
      %v1016 = vand.u32 %v203, 4294901760
      %1017 = vmatpush2.msra.mxu0 %v1016
      %1018 = vmatprep.subr.mxu0 0.0
      %v1019 = vand.u32 %v202, 4294901760
      %1020 = vmatpush2.msra.mxu0 %v1019
      %1021 = vmatprep.subr.mxu0 0.0
      %v1022 = vand.u32 %v201, 4294901760
      %1023 = vmatpush2.msra.mxu0 %v1022
      %1024 = vmatprep.subr.mxu0 0.0
      %v1025 = vand.u32 %v200, 4294901760
      %1026 = vmatpush2.msra.mxu0 %v1025
      %1027 = vmatprep.subr.mxu0 0.0
      %v1028 = vand.u32 %v199, 4294901760
      %1029 = vmatpush2.msra.mxu0 %v1028
      %1030 = vmatprep.subr.mxu0 0.0
      %v1031 = vand.u32 %v198, 4294901760
      %1032 = vmatpush2.msra.mxu0 %v1031
      %1033 = vmatprep.subr.mxu0 0.0
      %v1034 = vand.u32 %v197, 4294901760
      %1035 = vmatpush2.msra.mxu0 %v1034
      %1036 = vmatprep.subr.mxu0 0.0
      %v1037 = vand.u32 %v196, 4294901760
      %1038 = vmatpush2.msra.mxu0 %v1037
      %1039 = vmatprep.subr.mxu0 0.0
      %v1040 = vand.u32 %v195, 4294901760
      %1041 = vmatpush2.msra.mxu0 %v1040
      %1042 = vmatprep.subr.mxu0 0.0
      %v1043 = vand.u32 %v194, 4294901760
      %1044 = vmatpush2.msra.mxu0 %v1043
      %1045 = vmatprep.subr.mxu0 0.0
      %v1046 = vand.u32 %v193, 4294901760
      %1047 = vmatpush2.msra.mxu0 %v1046
      %1048 = vmatprep.subr.mxu0 0.0
      %v1049 = vand.u32 %v192, 4294901760
      %1050 = vmatpush2.msra.mxu0 %v1049
      %1051 = vmatprep.subr.mxu0 0.0
      %v1052 = vand.u32 %v191, 4294901760
      %1053 = vmatpush2.msra.mxu0 %v1052
      %1054 = vmatprep.subr.mxu0 0.0
      %v1055 = vand.u32 %v190, 4294901760
      %1056 = vmatpush2.msra.mxu0 %v1055
      %1057 = vmatprep.subr.mxu0 0.0
      %v1058 = vand.u32 %v189, 4294901760
      %1059 = vmatpush2.msra.mxu0 %v1058
      %v1060 = vand.u32 %v172, 4294901760
      %1061 = vmatprep.mubr.f32.mxu0 %v1060
      %v1062 = vand.u32 %v171, 4294901760
      %1063 = vmatmul.mubr.f32.gmra.mxu0 %v1062
      %v1064 = vpop.f32.mrf.mxu0
      %v1065 = vadd.f32 %v961, %v1064
      %v1066 = vpop.f32.mrf.mxu0
      %1067 = vdwg.mxu0
      %1068 = vst [vmem:[%s169] sm:$0xff] %v1065
      %p1069 = scmp.lt.s32.totalorder %s15, 1
      %s1070 = scalar_select %p1069, %s15, 1
      %s1071 = smul.addr %s1070, 8
      %s1072 = scalar_lea.vmem %s3, %s1071
      // Predicated region
      $region33: #{nn_original_gravity_forward.1} parent=31 // pred_check
        %p1073 = pneg %p101
      $region34: #{nn_original_gravity_forward.1} parent=31 // pred_check_branch
        %1075 = sbr.rel (%p1073) target = $region36
      $region35: #{nn_original_gravity_forward.1} parent=31 // pred_region
        _
      $region36: #{nn_original_gravity_forward.1} parent=31 // pred_fallthru
        _
    $region32: #{nn_original_gravity_forward.1} parent=5 // pred_fallthru
      _
    %p1076 = scmp.le.s32.totalorder 2, %s10
    // Predicated region
    $region37: #{nn_original_gravity_forward.1} parent=5 // pred_check
      %p1077 = pneg %p1076
    $region38: #{nn_original_gravity_forward.1} parent=5 // pred_check_branch
      %1079 = sbr.rel (%p1077) target = $region40
    $region39: #{nn_original_gravity_forward.1} parent=5 // pred_region
      %s1080 = ssub.s32 %s10, 2
      // Predicated region
      $region41: #{nn_original_gravity_forward.1} parent=39 // pred_check
        %p1081 = pneg %p107
      $region42: #{nn_original_gravity_forward.1} parent=39 // pred_check_branch
        %1083 = sbr.rel (%p1081) target = $region44
      $region43: #{nn_original_gravity_forward.1} parent=39 // pred_region
        %p1084 = scmp.lt.s32.totalorder %s16, 1
        %s1085 = scalar_select %p1084, %s16, 1
        %s1086 = smul.addr %s1085, 8
        %s1087 = scalar_lea.vmem %s3, %s1086
      $region44: #{nn_original_gravity_forward.1} parent=39 // pred_fallthru
        _
    $region40: #{nn_original_gravity_forward.1} parent=5 // pred_fallthru
      _
  $region6: #{nn_original_gravity_forward.1} parent=0 // loop_footer
    %s14 = sadd.s32 1, %s10
  $region7: #{nn_original_gravity_forward.1} parent=0 // loop_footer_branch
    %9 = sbr.rel target = $region3
  $region8: #{nn_original_gravity_forward.1} parent=0 // loop_exit
    _

</llo_original>
